<compile_context>
chip_gen: v6e
topology: v6e:2x2x1
jax: 0.10.0
libtpu: 0.0.40
codegen_flags: <defaults>
</compile_context>

<pallas_src>
import jax
import jax.numpy as jnp
from jax import lax
from jax.experimental import pallas as pl
from jax.experimental.pallas import tpu as pltpu


def _spectra_kernel(x_ref,
                    w1_ref, b1_ref, g1_ref, be1_ref, a1_ref,
                    w2_ref, b2_ref, g2_ref, be2_ref, a2_ref,
                    w3_ref, b3_ref,
                    agg_ref, f2_ref, fi_ref,
                    out_ref):
    """All data laid out as 2-D slabs: rows = channel*N + batch, lanes = spatial/spectral."""
    eps = 1e-5

    def dot(a, b):
        return jnp.dot(a, b, preferred_element_type=jnp.float32)

    x = x_ref[...]            # (Cin*N, H*W)
    agg = agg_ref[...]        # (Ci*N, Ci*N)  = kron(I_Ci, ones(N,N)/N)

    # ---------------- inConv: 1x1 conv + BatchNorm(train) + PReLU ----------------
    y = dot(w1_ref[...], x) + b1_ref[...]                       # (Ci*N, H*W)
    mu = jnp.mean(dot(agg, y), axis=-1, keepdims=True)          # per-channel mean, per row
    yc = y - mu
    var = jnp.mean(dot(agg, yc * yc), axis=-1, keepdims=True)   # biased channel variance
    y = yc * (g1_ref[...] * lax.rsqrt(var + eps)) + be1_ref[...]
    skip = jnp.where(y > 0, y, a1_ref[...] * y)                 # PReLU  -> skip connection

    # ---------------- rfft2: one fused 2-D real-DFT matmul -----------------------
    # spec rows = [Re(rfft2) flattened | Im(rfft2) flattened]  (width 2*H*K)
    spec = dot(skip, f2_ref[...])                               # (Ci*N, 2*H*K)

    # ------- midConv on cat([real, imag]): 1x1 conv + BatchNorm(train) + PReLU ----
    z = dot(w2_ref[...], spec) + b2_ref[...]
    mu2 = jnp.mean(dot(agg, z), axis=-1, keepdims=True)
    zc = z - mu2
    var2 = jnp.mean(dot(agg, zc * zc), axis=-1, keepdims=True)
    z = zc * (g2_ref[...] * lax.rsqrt(var2 + eps)) + be2_ref[...]
    z = jnp.where(z > 0, z, a2_ref[...] * z)

    # ---------------- irfft2 (one fused matmul) + skip + outConv ------------------
    sp = dot(z, fi_ref[...])                                    # (Ci*N, H*W)  real irfft2
    out_ref[...] = dot(w3_ref[...], sp + skip) + b3_ref[...]    # (Cin*N, H*W) lane-dense store


def _dft2_operators(H, W):
    """Dense 2-D real-DFT operators matching torch.fft.rfft2 / irfft2 (backward norm).

    F2   : (H*W, 2*H*K)  maps flattened real image -> [Re flat | Im flat] of rfft2
    Finv : (2*H*K, H*W)  maps [Re flat | Im flat]  -> flattened real irfft2 output
           (imag parts of DC / Nyquist W-bins do not contribute, as in C2R transforms).
    """
    K = W // 2 + 1
    f32 = jnp.float32
    h = jnp.arange(H, dtype=f32)
    w = jnp.arange(W, dtype=f32)
    u = jnp.arange(H, dtype=f32)
    k = jnp.arange(K, dtype=f32)

    # Forward: ang[h, w, u, k] = 2*pi*(u*h/H + k*w/W)
    ang = 2.0 * jnp.pi * (u[None, None, :, None] * h[:, None, None, None] / H
                          + k[None, None, None, :] * w[None, :, None, None] / W)
    f_re = jnp.cos(ang).reshape(H * W, H * K)
    f_im = (-jnp.sin(ang)).reshape(H * W, H * K)
    F2 = jnp.concatenate([f_re, f_im], axis=1)                  # (H*W, 2*H*K)

    # Inverse: Hermitian half-spectrum C2R weights along W, full ifft along H, 1/(H*W) norm.
    edge = (jnp.arange(K) == 0) | (jnp.arange(K) == K - 1)
    wc = jnp.where(edge, 1.0, 2.0).astype(f32)                  # real weights (DC/Nyquist = 1)
    ws = jnp.where(edge, 0.0, 2.0).astype(f32)                  # imag weights (DC/Nyquist = 0)
    psi = 2.0 * jnp.pi * k[:, None] * w[None, :] / W            # (K, W)
    c_kw = wc[:, None] * jnp.cos(psi)
    s_kw = ws[:, None] * jnp.sin(psi)
    phi = 2.0 * jnp.pi * u[:, None] * h[None, :] / H            # (H_u, H_h')
    cu = jnp.cos(phi)
    su = jnp.sin(phi)
    # [u, k, h', w] blocks
    Br = (cu[:, None, :, None] * c_kw[None, :, None, :]
          - su[:, None, :, None] * s_kw[None, :, None, :]) / (H * W)
    Bi = -(su[:, None, :, None] * c_kw[None, :, None, :]
           + cu[:, None, :, None] * s_kw[None, :, None, :]) / (H * W)
    Finv = jnp.concatenate([Br.reshape(H * K, H * W),
                            Bi.reshape(H * K, H * W)], axis=0)  # (2*H*K, H*W)
    return F2, Finv


def init_spectra_params(key, in_depth):
    ci = in_depth // 2 if in_depth >= 2 else in_depth
    ks = jax.random.split(key, 10)
    f32 = jnp.float32
    return {
        "w1": 0.4 * jax.random.normal(ks[0], (ci, in_depth), f32),
        "b1": 0.1 * jax.random.normal(ks[1], (ci,), f32),
        "g1": 1.0 + 0.1 * jax.random.normal(ks[2], (ci,), f32),
        "be1": 0.1 * jax.random.normal(ks[3], (ci,), f32),
        "a1": jnp.full((ci,), 0.25, f32),                # PReLU default init
        "w2": 0.4 * jax.random.normal(ks[4], (ci, ci), f32),
        "b2": 0.1 * jax.random.normal(ks[5], (ci,), f32),
        "g2": 1.0 + 0.1 * jax.random.normal(ks[6], (ci,), f32),
        "be2": 0.1 * jax.random.normal(ks[7], (ci,), f32),
        "a2": jnp.full((ci,), 0.25, f32),
        "w3": 0.4 * jax.random.normal(ks[8], (in_depth, ci), f32),
        "b3": 0.1 * jax.random.normal(ks[9], (in_depth,), f32),
    }


def spectra_forward(x, p):
    N, Cin, H, W = x.shape
    assert W % 2 == 0, "torch.fft.irfft2 default output length requires even W here"
    Ci = p["w1"].shape[0]
    f32 = jnp.float32

    # Dense 2-D DFT operators (host-built constants).
    F2, Finv = _dft2_operators(H, W)                    # (HW, 2HK), (2HK, HW)

    # Block 1x1-conv weights acting on the (channel*N, spatial) layout: kron(w, I_N).
    eyeN = jnp.eye(N, dtype=f32)
    W1b = jnp.kron(p["w1"].astype(f32), eyeN)           # (Ci*N, Cin*N)
    W2b = jnp.kron(p["w2"].astype(f32), eyeN)           # (Ci*N, Ci*N)
    W3b = jnp.kron(p["w3"].astype(f32), eyeN)           # (Cin*N, Ci*N)
    # Per-channel batch aggregation (mean over the N rows of each channel).
    agg = jnp.kron(jnp.eye(Ci, dtype=f32), jnp.full((N, N), 1.0 / N, f32))  # (Ci*N, Ci*N)

    def rows(v):  # per-channel scalar -> per-row column vector (C*N, 1)
        return jnp.repeat(v.astype(f32), N)[:, None]

    b1r, g1r, be1r, a1r = rows(p["b1"]), rows(p["g1"]), rows(p["be1"]), rows(p["a1"])
    b2r, g2r, be2r, a2r = rows(p["b2"]), rows(p["g2"]), rows(p["be2"]), rows(p["a2"])
    b3r = rows(p["b3"])

    # NCHW -> (Cin*N, H*W) slab (rows ordered channel-major, then batch).
    xr = jnp.transpose(x.astype(f32), (1, 0, 2, 3)).reshape(Cin * N, H * W)

    args = (xr,
            W1b, b1r, g1r, be1r, a1r,
            W2b, b2r, g2r, be2r, a2r,
            W3b, b3r,
            agg, F2, Finv)

    def vspec(a):
        nd = a.ndim
        return pl.BlockSpec(a.shape, lambda i, _nd=nd: (0,) * _nd)

    out2 = pl.pallas_call(
        _spectra_kernel,
        out_shape=jax.ShapeDtypeStruct((Cin * N, H * W), f32),
        grid=(1,),
        in_specs=[vspec(a) for a in args],
        out_specs=pl.BlockSpec((Cin * N, H * W), lambda i: (0, 0)),
        compiler_params=pltpu.CompilerParams(dimension_semantics=("arbitrary",)),
    )(*args)

    # (Cin*N, H*W) -> NCHW
    out = out2.reshape(Cin, N, H, W).transpose(1, 0, 2, 3)
    return out.astype(x.dtype)


if __name__ == "__main__":
    N, Cin, H, W = 2, 4, 16, 16
    key = jax.random.PRNGKey(0)
    kx, kp = jax.random.split(key)
    x = jax.random.normal(kx, (N, Cin, H, W), jnp.float32)
    params = init_spectra_params(kp, Cin)

    out = spectra_forward(x, params)
    out = jax.block_until_ready(out)

    assert out.shape == (N, Cin, H, W)
    assert out.dtype == jnp.float32
    assert bool(jnp.all(jnp.isfinite(out)))
    print("KERNEL_OK")
</pallas_src>

<mosaic_0001>
module attributes {stable_mosaic.version = 11 : i64} {
  func.func @_spectra_kernel(%arg0: i32, %arg1: memref<8x256xf32, #tpu.memory_space<vmem>>, %arg2: memref<4x8xf32, #tpu.memory_space<vmem>>, %arg3: memref<4x1xf32, #tpu.memory_space<vmem>>, %arg4: memref<4x1xf32, #tpu.memory_space<vmem>>, %arg5: memref<4x1xf32, #tpu.memory_space<vmem>>, %arg6: memref<4x1xf32, #tpu.memory_space<vmem>>, %arg7: memref<4x4xf32, #tpu.memory_space<vmem>>, %arg8: memref<4x1xf32, #tpu.memory_space<vmem>>, %arg9: memref<4x1xf32, #tpu.memory_space<vmem>>, %arg10: memref<4x1xf32, #tpu.memory_space<vmem>>, %arg11: memref<4x1xf32, #tpu.memory_space<vmem>>, %arg12: memref<8x4xf32, #tpu.memory_space<vmem>>, %arg13: memref<8x1xf32, #tpu.memory_space<vmem>>, %arg14: memref<4x4xf32, #tpu.memory_space<vmem>>, %arg15: memref<256x288xf32, #tpu.memory_space<vmem>>, %arg16: memref<288x256xf32, #tpu.memory_space<vmem>>, %arg17: memref<8x256xf32, #tpu.memory_space<vmem>>) attributes {dimension_semantics = [#tpu.dimension_semantics<arbitrary>], iteration_bounds = array<i64: 1>, scalar_prefetch = 0 : i64, scratch_operands = 0 : i64, tpu.core_type = #tpu.core_type<tc>, window_params = [{pipeline_mode = #tpu.pipeline_mode<synchronous>, transform_indices = @transform_0, window_bounds = array<i64: 8, 256>}, {pipeline_mode = #tpu.pipeline_mode<synchronous>, transform_indices = @transform_1, window_bounds = array<i64: 4, 8>}, {pipeline_mode = #tpu.pipeline_mode<synchronous>, transform_indices = @transform_2, window_bounds = array<i64: 4, 1>}, {pipeline_mode = #tpu.pipeline_mode<synchronous>, transform_indices = @transform_3, window_bounds = array<i64: 4, 1>}, {pipeline_mode = #tpu.pipeline_mode<synchronous>, transform_indices = @transform_4, window_bounds = array<i64: 4, 1>}, {pipeline_mode = #tpu.pipeline_mode<synchronous>, transform_indices = @transform_5, window_bounds = array<i64: 4, 1>}, {pipeline_mode = #tpu.pipeline_mode<synchronous>, transform_indices = @transform_6, window_bounds = array<i64: 4, 4>}, {pipeline_mode = #tpu.pipeline_mode<synchronous>, transform_indices = @transform_7, window_bounds = array<i64: 4, 1>}, {pipeline_mode = #tpu.pipeline_mode<synchronous>, transform_indices = @transform_8, window_bounds = array<i64: 4, 1>}, {pipeline_mode = #tpu.pipeline_mode<synchronous>, transform_indices = @transform_9, window_bounds = array<i64: 4, 1>}, {pipeline_mode = #tpu.pipeline_mode<synchronous>, transform_indices = @transform_10, window_bounds = array<i64: 4, 1>}, {pipeline_mode = #tpu.pipeline_mode<synchronous>, transform_indices = @transform_11, window_bounds = array<i64: 8, 4>}, {pipeline_mode = #tpu.pipeline_mode<synchronous>, transform_indices = @transform_12, window_bounds = array<i64: 8, 1>}, {pipeline_mode = #tpu.pipeline_mode<synchronous>, transform_indices = @transform_13, window_bounds = array<i64: 4, 4>}, {pipeline_mode = #tpu.pipeline_mode<synchronous>, transform_indices = @transform_14, window_bounds = array<i64: 256, 288>}, {pipeline_mode = #tpu.pipeline_mode<synchronous>, transform_indices = @transform_15, window_bounds = array<i64: 288, 256>}, {pipeline_mode = #tpu.pipeline_mode<synchronous>, transform_indices = @transform_16, window_bounds = array<i64: 8, 256>}]} {
    %c0 = arith.constant 0 : index
    %c0_0 = arith.constant 0 : index
    %0 = vector.load %arg1[%c0, %c0_0] : memref<8x256xf32, #tpu.memory_space<vmem>>, vector<8x256xf32>
    %c0_1 = arith.constant 0 : index
    %c0_2 = arith.constant 0 : index
    %1 = vector.load %arg14[%c0_1, %c0_2] : memref<4x4xf32, #tpu.memory_space<vmem>>, vector<4x4xf32>
    %c0_3 = arith.constant 0 : index
    %c0_4 = arith.constant 0 : index
    %2 = vector.load %arg2[%c0_3, %c0_4] : memref<4x8xf32, #tpu.memory_space<vmem>>, vector<4x8xf32>
    %cst = arith.constant dense<0.000000e+00> : vector<4x256xf32>
    %3 = tpu.matmul %2, %0, %cst {dimension_numbers = #tpu.dot_dimension_numbers<[1], [0], [0], [1], [0, 0, 1, 1], [], []>} : vector<4x8xf32>, vector<8x256xf32>, vector<4x256xf32> -> vector<4x256xf32>
    %c0_5 = arith.constant 0 : index
    %c0_6 = arith.constant 0 : index
    %4 = vector.load %arg3[%c0_5, %c0_6] : memref<4x1xf32, #tpu.memory_space<vmem>>, vector<4x1xf32>
    %5 = vector.broadcast %4 : vector<4x1xf32> to vector<4x256xf32>
    %6 = arith.addf %3, %5 : vector<4x256xf32>
    %cst_7 = arith.constant dense<0.000000e+00> : vector<4x256xf32>
    %7 = tpu.matmul %1, %6, %cst_7 {dimension_numbers = #tpu.dot_dimension_numbers<[1], [0], [0], [1], [0, 0, 1, 1], [], []>} : vector<4x4xf32>, vector<4x256xf32>, vector<4x256xf32> -> vector<4x256xf32>
    %cst_8 = arith.constant dense<0.000000e+00> : vector<4xf32>
    %8 = vector.multi_reduction <add>, %7, %cst_8 [1] : vector<4x256xf32> to vector<4xf32>
    %9 = vector.shape_cast %8 : vector<4xf32> to vector<4x1xf32>
    %cst_9 = arith.constant 2.560000e+02 : f32
    %10 = vector.broadcast %cst_9 : f32 to vector<4x1xf32>
    %11 = arith.divf %9, %10 : vector<4x1xf32>
    %12 = vector.broadcast %11 : vector<4x1xf32> to vector<4x256xf32>
    %13 = arith.subf %6, %12 : vector<4x256xf32>
    %14 = arith.mulf %13, %13 : vector<4x256xf32>
    %cst_10 = arith.constant dense<0.000000e+00> : vector<4x256xf32>
    %15 = tpu.matmul %1, %14, %cst_10 {dimension_numbers = #tpu.dot_dimension_numbers<[1], [0], [0], [1], [0, 0, 1, 1], [], []>} : vector<4x4xf32>, vector<4x256xf32>, vector<4x256xf32> -> vector<4x256xf32>
    %cst_11 = arith.constant dense<0.000000e+00> : vector<4xf32>
    %16 = vector.multi_reduction <add>, %15, %cst_11 [1] : vector<4x256xf32> to vector<4xf32>
    %17 = vector.shape_cast %16 : vector<4xf32> to vector<4x1xf32>
    %cst_12 = arith.constant 2.560000e+02 : f32
    %18 = vector.broadcast %cst_12 : f32 to vector<4x1xf32>
    %19 = arith.divf %17, %18 : vector<4x1xf32>
    %c0_13 = arith.constant 0 : index
    %c0_14 = arith.constant 0 : index
    %20 = vector.load %arg4[%c0_13, %c0_14] : memref<4x1xf32, #tpu.memory_space<vmem>>, vector<4x1xf32>
    %cst_15 = arith.constant 9.99999974E-6 : f32
    %21 = vector.broadcast %cst_15 : f32 to vector<4x1xf32>
    %22 = arith.addf %19, %21 : vector<4x1xf32>
    %23 = math.rsqrt %22 : vector<4x1xf32>
    %24 = arith.mulf %20, %23 : vector<4x1xf32>
    %25 = vector.broadcast %24 : vector<4x1xf32> to vector<4x256xf32>
    %26 = arith.mulf %13, %25 : vector<4x256xf32>
    %c0_16 = arith.constant 0 : index
    %c0_17 = arith.constant 0 : index
    %27 = vector.load %arg5[%c0_16, %c0_17] : memref<4x1xf32, #tpu.memory_space<vmem>>, vector<4x1xf32>
    %28 = vector.broadcast %27 : vector<4x1xf32> to vector<4x256xf32>
    %29 = arith.addf %26, %28 : vector<4x256xf32>
    %cst_18 = arith.constant 0.000000e+00 : f32
    %30 = vector.broadcast %cst_18 : f32 to vector<4x256xf32>
    %31 = arith.cmpf ogt, %29, %30 : vector<4x256xf32>
    %c0_19 = arith.constant 0 : index
    %c0_20 = arith.constant 0 : index
    %32 = vector.load %arg6[%c0_19, %c0_20] : memref<4x1xf32, #tpu.memory_space<vmem>>, vector<4x1xf32>
    %33 = vector.broadcast %32 : vector<4x1xf32> to vector<4x256xf32>
    %34 = arith.mulf %33, %29 : vector<4x256xf32>
    %35 = arith.select %31, %29, %34 : vector<4x256xi1>, vector<4x256xf32>
    %c0_21 = arith.constant 0 : index
    %c0_22 = arith.constant 0 : index
    %36 = vector.load %arg15[%c0_21, %c0_22] : memref<256x288xf32, #tpu.memory_space<vmem>>, vector<256x288xf32>
    %cst_23 = arith.constant dense<0.000000e+00> : vector<4x288xf32>
    %37 = tpu.matmul %35, %36, %cst_23 {dimension_numbers = #tpu.dot_dimension_numbers<[1], [0], [0], [1], [0, 0, 1, 1], [], []>} : vector<4x256xf32>, vector<256x288xf32>, vector<4x288xf32> -> vector<4x288xf32>
    %c0_24 = arith.constant 0 : index
    %c0_25 = arith.constant 0 : index
    %38 = vector.load %arg7[%c0_24, %c0_25] : memref<4x4xf32, #tpu.memory_space<vmem>>, vector<4x4xf32>
    %cst_26 = arith.constant dense<0.000000e+00> : vector<4x288xf32>
    %39 = tpu.matmul %38, %37, %cst_26 {dimension_numbers = #tpu.dot_dimension_numbers<[1], [0], [0], [1], [0, 0, 1, 1], [], []>} : vector<4x4xf32>, vector<4x288xf32>, vector<4x288xf32> -> vector<4x288xf32>
    %c0_27 = arith.constant 0 : index
    %c0_28 = arith.constant 0 : index
    %40 = vector.load %arg8[%c0_27, %c0_28] : memref<4x1xf32, #tpu.memory_space<vmem>>, vector<4x1xf32>
    %41 = vector.broadcast %40 : vector<4x1xf32> to vector<4x288xf32>
    %42 = arith.addf %39, %41 : vector<4x288xf32>
    %cst_29 = arith.constant dense<0.000000e+00> : vector<4x288xf32>
    %43 = tpu.matmul %1, %42, %cst_29 {dimension_numbers = #tpu.dot_dimension_numbers<[1], [0], [0], [1], [0, 0, 1, 1], [], []>} : vector<4x4xf32>, vector<4x288xf32>, vector<4x288xf32> -> vector<4x288xf32>
    %cst_30 = arith.constant dense<0.000000e+00> : vector<4xf32>
    %44 = vector.multi_reduction <add>, %43, %cst_30 [1] : vector<4x288xf32> to vector<4xf32>
    %45 = vector.shape_cast %44 : vector<4xf32> to vector<4x1xf32>
    %cst_31 = arith.constant 2.880000e+02 : f32
    %46 = vector.broadcast %cst_31 : f32 to vector<4x1xf32>
    %47 = arith.divf %45, %46 : vector<4x1xf32>
    %48 = vector.broadcast %47 : vector<4x1xf32> to vector<4x288xf32>
    %49 = arith.subf %42, %48 : vector<4x288xf32>
    %50 = arith.mulf %49, %49 : vector<4x288xf32>
    %cst_32 = arith.constant dense<0.000000e+00> : vector<4x288xf32>
    %51 = tpu.matmul %1, %50, %cst_32 {dimension_numbers = #tpu.dot_dimension_numbers<[1], [0], [0], [1], [0, 0, 1, 1], [], []>} : vector<4x4xf32>, vector<4x288xf32>, vector<4x288xf32> -> vector<4x288xf32>
    %cst_33 = arith.constant dense<0.000000e+00> : vector<4xf32>
    %52 = vector.multi_reduction <add>, %51, %cst_33 [1] : vector<4x288xf32> to vector<4xf32>
    %53 = vector.shape_cast %52 : vector<4xf32> to vector<4x1xf32>
    %cst_34 = arith.constant 2.880000e+02 : f32
    %54 = vector.broadcast %cst_34 : f32 to vector<4x1xf32>
    %55 = arith.divf %53, %54 : vector<4x1xf32>
    %c0_35 = arith.constant 0 : index
    %c0_36 = arith.constant 0 : index
    %56 = vector.load %arg9[%c0_35, %c0_36] : memref<4x1xf32, #tpu.memory_space<vmem>>, vector<4x1xf32>
    %cst_37 = arith.constant 9.99999974E-6 : f32
    %57 = vector.broadcast %cst_37 : f32 to vector<4x1xf32>
    %58 = arith.addf %55, %57 : vector<4x1xf32>
    %59 = math.rsqrt %58 : vector<4x1xf32>
    %60 = arith.mulf %56, %59 : vector<4x1xf32>
    %61 = vector.broadcast %60 : vector<4x1xf32> to vector<4x288xf32>
    %62 = arith.mulf %49, %61 : vector<4x288xf32>
    %c0_38 = arith.constant 0 : index
    %c0_39 = arith.constant 0 : index
    %63 = vector.load %arg10[%c0_38, %c0_39] : memref<4x1xf32, #tpu.memory_space<vmem>>, vector<4x1xf32>
    %64 = vector.broadcast %63 : vector<4x1xf32> to vector<4x288xf32>
    %65 = arith.addf %62, %64 : vector<4x288xf32>
    %cst_40 = arith.constant 0.000000e+00 : f32
    %66 = vector.broadcast %cst_40 : f32 to vector<4x288xf32>
    %67 = arith.cmpf ogt, %65, %66 : vector<4x288xf32>
    %c0_41 = arith.constant 0 : index
    %c0_42 = arith.constant 0 : index
    %68 = vector.load %arg11[%c0_41, %c0_42] : memref<4x1xf32, #tpu.memory_space<vmem>>, vector<4x1xf32>
    %69 = vector.broadcast %68 : vector<4x1xf32> to vector<4x288xf32>
    %70 = arith.mulf %69, %65 : vector<4x288xf32>
    %71 = arith.select %67, %65, %70 : vector<4x288xi1>, vector<4x288xf32>
    %c0_43 = arith.constant 0 : index
    %c0_44 = arith.constant 0 : index
    %72 = vector.load %arg16[%c0_43, %c0_44] : memref<288x256xf32, #tpu.memory_space<vmem>>, vector<288x256xf32>
    %cst_45 = arith.constant dense<0.000000e+00> : vector<4x256xf32>
    %73 = tpu.matmul %71, %72, %cst_45 {dimension_numbers = #tpu.dot_dimension_numbers<[1], [0], [0], [1], [0, 0, 1, 1], [], []>} : vector<4x288xf32>, vector<288x256xf32>, vector<4x256xf32> -> vector<4x256xf32>
    %c0_46 = arith.constant 0 : index
    %c0_47 = arith.constant 0 : index
    %74 = vector.load %arg12[%c0_46, %c0_47] : memref<8x4xf32, #tpu.memory_space<vmem>>, vector<8x4xf32>
    %75 = arith.addf %73, %35 : vector<4x256xf32>
    %cst_48 = arith.constant dense<0.000000e+00> : vector<8x256xf32>
    %76 = tpu.matmul %74, %75, %cst_48 {dimension_numbers = #tpu.dot_dimension_numbers<[1], [0], [0], [1], [0, 0, 1, 1], [], []>} : vector<8x4xf32>, vector<4x256xf32>, vector<8x256xf32> -> vector<8x256xf32>
    %c0_49 = arith.constant 0 : index
    %c0_50 = arith.constant 0 : index
    %77 = vector.load %arg13[%c0_49, %c0_50] : memref<8x1xf32, #tpu.memory_space<vmem>>, vector<8x1xf32>
    %78 = vector.broadcast %77 : vector<8x1xf32> to vector<8x256xf32>
    %79 = arith.addf %76, %78 : vector<8x256xf32>
    %c0_51 = arith.constant 0 : index
    %c0_52 = arith.constant 0 : index
    %80 = vector.load %arg17[%c0_51, %c0_52] : memref<8x256xf32, #tpu.memory_space<vmem>>, vector<8x256xf32>
    tpu.vector_store %arg17[%c0_51, %c0_52], %79 {strides = array<i32>} : memref<8x256xf32, #tpu.memory_space<vmem>>, vector<8x256xf32>,
    return
  }
  func.func @transform_0(%arg0: i32) -> (i32, i32) {
    %c0_i32 = arith.constant 0 : i32
    %c0_i32_0 = arith.constant 0 : i32
    %c0_i32_1 = arith.constant 0 : i32
    return %c0_i32, %c0_i32_0 : i32, i32
  }
  func.func @transform_1(%arg0: i32) -> (i32, i32) {
    %c0_i32 = arith.constant 0 : i32
    %c0_i32_0 = arith.constant 0 : i32
    %c0_i32_1 = arith.constant 0 : i32
    return %c0_i32, %c0_i32_0 : i32, i32
  }
  func.func @transform_2(%arg0: i32) -> (i32, i32) {
    %c0_i32 = arith.constant 0 : i32
    %c0_i32_0 = arith.constant 0 : i32
    %c0_i32_1 = arith.constant 0 : i32
    return %c0_i32, %c0_i32_0 : i32, i32
  }
  func.func @transform_3(%arg0: i32) -> (i32, i32) {
    %c0_i32 = arith.constant 0 : i32
    %c0_i32_0 = arith.constant 0 : i32
    %c0_i32_1 = arith.constant 0 : i32
    return %c0_i32, %c0_i32_0 : i32, i32
  }
  func.func @transform_4(%arg0: i32) -> (i32, i32) {
    %c0_i32 = arith.constant 0 : i32
    %c0_i32_0 = arith.constant 0 : i32
    %c0_i32_1 = arith.constant 0 : i32
    return %c0_i32, %c0_i32_0 : i32, i32
  }
  func.func @transform_5(%arg0: i32) -> (i32, i32) {
    %c0_i32 = arith.constant 0 : i32
    %c0_i32_0 = arith.constant 0 : i32
    %c0_i32_1 = arith.constant 0 : i32
    return %c0_i32, %c0_i32_0 : i32, i32
  }
  func.func @transform_6(%arg0: i32) -> (i32, i32) {
    %c0_i32 = arith.constant 0 : i32
    %c0_i32_0 = arith.constant 0 : i32
    %c0_i32_1 = arith.constant 0 : i32
    return %c0_i32, %c0_i32_0 : i32, i32
  }
  func.func @transform_7(%arg0: i32) -> (i32, i32) {
    %c0_i32 = arith.constant 0 : i32
    %c0_i32_0 = arith.constant 0 : i32
    %c0_i32_1 = arith.constant 0 : i32
    return %c0_i32, %c0_i32_0 : i32, i32
  }
  func.func @transform_8(%arg0: i32) -> (i32, i32) {
    %c0_i32 = arith.constant 0 : i32
    %c0_i32_0 = arith.constant 0 : i32
    %c0_i32_1 = arith.constant 0 : i32
    return %c0_i32, %c0_i32_0 : i32, i32
  }
  func.func @transform_9(%arg0: i32) -> (i32, i32) {
    %c0_i32 = arith.constant 0 : i32
    %c0_i32_0 = arith.constant 0 : i32
    %c0_i32_1 = arith.constant 0 : i32
    return %c0_i32, %c0_i32_0 : i32, i32
  }
  func.func @transform_10(%arg0: i32) -> (i32, i32) {
    %c0_i32 = arith.constant 0 : i32
    %c0_i32_0 = arith.constant 0 : i32
    %c0_i32_1 = arith.constant 0 : i32
    return %c0_i32, %c0_i32_0 : i32, i32
  }
  func.func @transform_11(%arg0: i32) -> (i32, i32) {
    %c0_i32 = arith.constant 0 : i32
    %c0_i32_0 = arith.constant 0 : i32
    %c0_i32_1 = arith.constant 0 : i32
    return %c0_i32, %c0_i32_0 : i32, i32
  }
  func.func @transform_12(%arg0: i32) -> (i32, i32) {
    %c0_i32 = arith.constant 0 : i32
    %c0_i32_0 = arith.constant 0 : i32
    %c0_i32_1 = arith.constant 0 : i32
    return %c0_i32, %c0_i32_0 : i32, i32
  }
  func.func @transform_13(%arg0: i32) -> (i32, i32) {
    %c0_i32 = arith.constant 0 : i32
    %c0_i32_0 = arith.constant 0 : i32
    %c0_i32_1 = arith.constant 0 : i32
    return %c0_i32, %c0_i32_0 : i32, i32
  }
  func.func @transform_14(%arg0: i32) -> (i32, i32) {
    %c0_i32 = arith.constant 0 : i32
    %c0_i32_0 = arith.constant 0 : i32
    %c0_i32_1 = arith.constant 0 : i32
    return %c0_i32, %c0_i32_0 : i32, i32
  }
  func.func @transform_15(%arg0: i32) -> (i32, i32) {
    %c0_i32 = arith.constant 0 : i32
    %c0_i32_0 = arith.constant 0 : i32
    %c0_i32_1 = arith.constant 0 : i32
    return %c0_i32, %c0_i32_0 : i32, i32
  }
  func.func @transform_16(%arg0: i32) -> (i32, i32) {
    %c0_i32 = arith.constant 0 : i32
    %c0_i32_0 = arith.constant 0 : i32
    %c0_i32_1 = arith.constant 0 : i32
    return %c0_i32, %c0_i32_0 : i32, i32
  }
}

</mosaic_0001>

<llo_original>
// kernel: tpu_custom_call.1
$region0: #{tpu_custom_call.1}
  #allocation0 [shape = 'u32[]', space=smem, size = 0x4, offset = 0x4, fixed_abs, tag = 'smem constant byte address 0x4 - core index']
  #allocation1 [shape = 'u32[144,128]{1,0:T(1,128)}', space=vmem, size = 0x12000, scoped, tag = 'internal scratch']
  %s0 = inlined_call_operand.vmem [shape: f32[8,256], index: 0, kind: input, shape index: {}]
  %s1 = inlined_call_operand.vmem [shape: f32[4,8], index: 1, kind: input, shape index: {}]
  %s2 = inlined_call_operand.vmem [shape: f32[4,1], index: 2, kind: input, shape index: {}]
  %s3 = inlined_call_operand.vmem [shape: f32[4,1], index: 3, kind: input, shape index: {}]
  %s4 = inlined_call_operand.vmem [shape: f32[4,1], index: 4, kind: input, shape index: {}]
  %s5 = inlined_call_operand.vmem [shape: f32[4,1], index: 5, kind: input, shape index: {}]
  %s6 = inlined_call_operand.vmem [shape: f32[4,4], index: 6, kind: input, shape index: {}]
  %s7 = inlined_call_operand.vmem [shape: f32[4,1], index: 7, kind: input, shape index: {}]
  %s8 = inlined_call_operand.vmem [shape: f32[4,1], index: 8, kind: input, shape index: {}]
  %s9 = inlined_call_operand.vmem [shape: f32[4,1], index: 9, kind: input, shape index: {}]
  %s10 = inlined_call_operand.vmem [shape: f32[4,1], index: 10, kind: input, shape index: {}]
  %s11 = inlined_call_operand.vmem [shape: f32[8,4], index: 11, kind: input, shape index: {}]
  %s12 = inlined_call_operand.vmem [shape: f32[8,1], index: 12, kind: input, shape index: {}]
  %s13 = inlined_call_operand.vmem [shape: f32[4,4], index: 13, kind: input, shape index: {}]
  %s14 = inlined_call_operand.vmem [shape: f32[256,288], index: 14, kind: input, shape index: {}]
  %s15 = inlined_call_operand.vmem [shape: f32[288,256], index: 15, kind: input, shape index: {}]
  %s16 = inlined_call_operand.hbm [shape: f32[8,256], index: 16, kind: output, shape index: {}]
  %s17 = sld [smem:[#allocation0]]
  $region74: #{tpu_custom_call.1} parent=0
    _
  %s19 = ssub.s32 1, %s17
  %s20 = scalar_select 0, %s19, %s17
  $region1: #{tpu_custom_call.1} parent=0
    #allocation2 [shape = 'u8[8192]{0}', space=vmem, size = 0x2000, scoped, tag = 'output window, operand 0, single buffered']
    #allocation3 [shape = 's32[1]{0}', space=sflag, size = 0x4, scoped, tag = 'scoped memory for tpu_custom_call.1']
    %21 = vsyncpa [#allocation3], 0
    // Predicated region
    $region2: #{tpu_custom_call.1} parent=1 // pred_check
      _
    $region3: #{tpu_custom_call.1} parent=1 // pred_check_branch
      %23 = sbr.rel (0) target = $region5
    $region4: #{tpu_custom_call.1} parent=1 // pred_region
      _
    $region5: #{tpu_custom_call.1} parent=1 // pred_fallthru
      _
    // Predicated region
    $region6: #{tpu_custom_call.1} parent=1 // pred_check
      _
    $region7: #{tpu_custom_call.1} parent=1 // pred_check_branch
      %25 = sbr.rel (0) target = $region9
    $region8: #{tpu_custom_call.1} parent=1 // pred_region
      _
    $region9: #{tpu_custom_call.1} parent=1 // pred_fallthru
      _
    // Predicated region
    $region10: #{tpu_custom_call.1} parent=1 // pred_check
      _
    $region11: #{tpu_custom_call.1} parent=1 // pred_check_branch
      %27 = sbr.rel (0) target = $region13
    $region12: #{tpu_custom_call.1} parent=1 // pred_region
      _
    $region13: #{tpu_custom_call.1} parent=1 // pred_fallthru
      _
    // Predicated region
    $region14: #{tpu_custom_call.1} parent=1 // pred_check
      _
    $region15: #{tpu_custom_call.1} parent=1 // pred_check_branch
      %29 = sbr.rel (0) target = $region17
    $region16: #{tpu_custom_call.1} parent=1 // pred_region
      _
    $region17: #{tpu_custom_call.1} parent=1 // pred_fallthru
      _
    // Predicated region
    $region18: #{tpu_custom_call.1} parent=1 // pred_check
      _
    $region19: #{tpu_custom_call.1} parent=1 // pred_check_branch
      %31 = sbr.rel (0) target = $region21
    $region20: #{tpu_custom_call.1} parent=1 // pred_region
      _
    $region21: #{tpu_custom_call.1} parent=1 // pred_fallthru
      _
    // Predicated region
    $region22: #{tpu_custom_call.1} parent=1 // pred_check
      _
    $region23: #{tpu_custom_call.1} parent=1 // pred_check_branch
      %33 = sbr.rel (0) target = $region25
    $region24: #{tpu_custom_call.1} parent=1 // pred_region
      _
    $region25: #{tpu_custom_call.1} parent=1 // pred_fallthru
      _
    // Predicated region
    $region26: #{tpu_custom_call.1} parent=1 // pred_check
      _
    $region27: #{tpu_custom_call.1} parent=1 // pred_check_branch
      %35 = sbr.rel (0) target = $region29
    $region28: #{tpu_custom_call.1} parent=1 // pred_region
      _
    $region29: #{tpu_custom_call.1} parent=1 // pred_fallthru
      _
    // Predicated region
    $region30: #{tpu_custom_call.1} parent=1 // pred_check
      _
    $region31: #{tpu_custom_call.1} parent=1 // pred_check_branch
      %37 = sbr.rel (0) target = $region33
    $region32: #{tpu_custom_call.1} parent=1 // pred_region
      _
    $region33: #{tpu_custom_call.1} parent=1 // pred_fallthru
      _
    // Predicated region
    $region34: #{tpu_custom_call.1} parent=1 // pred_check
      _
    $region35: #{tpu_custom_call.1} parent=1 // pred_check_branch
      %39 = sbr.rel (0) target = $region37
    $region36: #{tpu_custom_call.1} parent=1 // pred_region
      _
    $region37: #{tpu_custom_call.1} parent=1 // pred_fallthru
      _
    // Predicated region
    $region38: #{tpu_custom_call.1} parent=1 // pred_check
      _
    $region39: #{tpu_custom_call.1} parent=1 // pred_check_branch
      %41 = sbr.rel (0) target = $region41
    $region40: #{tpu_custom_call.1} parent=1 // pred_region
      _
    $region41: #{tpu_custom_call.1} parent=1 // pred_fallthru
      _
    // Predicated region
    $region42: #{tpu_custom_call.1} parent=1 // pred_check
      _
    $region43: #{tpu_custom_call.1} parent=1 // pred_check_branch
      %43 = sbr.rel (0) target = $region45
    $region44: #{tpu_custom_call.1} parent=1 // pred_region
      _
    $region45: #{tpu_custom_call.1} parent=1 // pred_fallthru
      _
    // Predicated region
    $region46: #{tpu_custom_call.1} parent=1 // pred_check
      _
    $region47: #{tpu_custom_call.1} parent=1 // pred_check_branch
      %45 = sbr.rel (0) target = $region49
    $region48: #{tpu_custom_call.1} parent=1 // pred_region
      _
    $region49: #{tpu_custom_call.1} parent=1 // pred_fallthru
      _
    // Predicated region
    $region50: #{tpu_custom_call.1} parent=1 // pred_check
      _
    $region51: #{tpu_custom_call.1} parent=1 // pred_check_branch
      %47 = sbr.rel (0) target = $region53
    $region52: #{tpu_custom_call.1} parent=1 // pred_region
      _
    $region53: #{tpu_custom_call.1} parent=1 // pred_fallthru
      _
    // Predicated region
    $region54: #{tpu_custom_call.1} parent=1 // pred_check
      _
    $region55: #{tpu_custom_call.1} parent=1 // pred_check_branch
      %49 = sbr.rel (0) target = $region57
    $region56: #{tpu_custom_call.1} parent=1 // pred_region
      _
    $region57: #{tpu_custom_call.1} parent=1 // pred_fallthru
      _
    // Predicated region
    $region58: #{tpu_custom_call.1} parent=1 // pred_check
      _
    $region59: #{tpu_custom_call.1} parent=1 // pred_check_branch
      %51 = sbr.rel (0) target = $region61
    $region60: #{tpu_custom_call.1} parent=1 // pred_region
      _
    $region61: #{tpu_custom_call.1} parent=1 // pred_fallthru
      _
    // Predicated region
    $region62: #{tpu_custom_call.1} parent=1 // pred_check
      _
    $region63: #{tpu_custom_call.1} parent=1 // pred_check_branch
      %53 = sbr.rel (0) target = $region65
    $region64: #{tpu_custom_call.1} parent=1 // pred_region
      _
    $region65: #{tpu_custom_call.1} parent=1 // pred_fallthru
      _
    %v54 = vld [vmem:[%s0] sm:$0xff]
    %v55 = vld [vmem:[%s0 + $0x8] sm:$0xff]
    %v56 = vld [vmem:[%s13] sm:$0xf]
    %v57 = vld [vmem:[%s1] sm:$0xf]
    %v58 = vld [vmem:[%s2] sm:$0xf]
    %60 = vset.pattern.permute.xlu0 0
    %61 = vperm.xlu0 %60, %v58
    %v62 = vpop.permute.xlu0 %61
    %vm64 = vcmask 64512
    %v66 = vsel %vm64, %v57, 0
    %68 = vmatprep.subr.mxu0 0.0
    %69 = vmatpush1.msra.mxu0 0.0
    %70 = vmatprep.subr.mxu0 0.0
    %71 = vmatpush1.msra.mxu0 0.0
    %72 = vmatprep.subr.mxu0 0.0
    %73 = vmatpush1.msra.mxu0 0.0
    %74 = vmatprep.subr.mxu0 0.0
    %75 = vmatpush1.msra.mxu0 0.0
    %76 = vmatprep.subr.mxu0 0.0
    %77 = vmatpush1.msra.mxu0 0.0
    %78 = vmatprep.subr.mxu0 0.0
    %79 = vmatpush1.msra.mxu0 0.0
    %80 = vmatprep.subr.mxu0 0.0
    %81 = vmatpush1.msra.mxu0 0.0
    %82 = vmatprep.subr.mxu0 0.0
    %83 = vmatpush1.msra.mxu0 0.0
    %84 = vmatprep.subr.mxu0 0.0
    %85 = vmatpush1.msra.mxu0 0.0
    %86 = vmatprep.subr.mxu0 0.0
    %87 = vmatpush1.msra.mxu0 0.0
    %88 = vmatprep.subr.mxu0 0.0
    %89 = vmatpush1.msra.mxu0 0.0
    %90 = vmatprep.subr.mxu0 0.0
    %91 = vmatpush1.msra.mxu0 0.0
    %92 = vmatprep.subr.mxu0 0.0
    %93 = vmatpush1.msra.mxu0 0.0
    %94 = vmatprep.subr.mxu0 0.0
    %95 = vmatpush1.msra.mxu0 0.0
    %96 = vmatprep.subr.mxu0 0.0
    %97 = vmatpush1.msra.mxu0 0.0
    %98 = vmatprep.subr.mxu0 %v55
    %99 = vmatpush1.msra.mxu0 %v54
    %100 = vmatprep.subr.mxu0 0.0
    %101 = vmatpush2.msra.mxu0 0.0
    %102 = vmatprep.subr.mxu0 0.0
    %103 = vmatpush2.msra.mxu0 0.0
    %104 = vmatprep.subr.mxu0 0.0
    %105 = vmatpush2.msra.mxu0 0.0
    %106 = vmatprep.subr.mxu0 0.0
    %107 = vmatpush2.msra.mxu0 0.0
    %108 = vmatprep.subr.mxu0 0.0
    %109 = vmatpush2.msra.mxu0 0.0
    %110 = vmatprep.subr.mxu0 0.0
    %111 = vmatpush2.msra.mxu0 0.0
    %112 = vmatprep.subr.mxu0 0.0
    %113 = vmatpush2.msra.mxu0 0.0
    %114 = vmatprep.subr.mxu0 0.0
    %115 = vmatpush2.msra.mxu0 0.0
    %116 = vmatprep.subr.mxu0 0.0
    %117 = vmatpush2.msra.mxu0 0.0
    %118 = vmatprep.subr.mxu0 0.0
    %119 = vmatpush2.msra.mxu0 0.0
    %120 = vmatprep.subr.mxu0 0.0
    %121 = vmatpush2.msra.mxu0 0.0
    %122 = vmatprep.subr.mxu0 0.0
    %123 = vmatpush2.msra.mxu0 0.0
    %124 = vmatprep.subr.mxu0 0.0
    %125 = vmatpush2.msra.mxu0 0.0
    %126 = vmatprep.subr.mxu0 0.0
    %127 = vmatpush2.msra.mxu0 0.0
    %128 = vmatprep.subr.mxu0 0.0
    %129 = vmatpush2.msra.mxu0 0.0
    %130 = vmatprep.subr.mxu0 0.0
    %131 = vmatpush2.msra.mxu0 0.0
    %132 = vmatprep.mubr.f32.mxu0 0.0
    %133 = vmatmul.mubr.f32.gmra.mxu0 %v66
    %v134 = vpop.f32.mrf.mxu0
    %v135 = vadd.f32 %v62, %v134
    %v136 = vpop.f32.mrf.mxu0
    %v137 = vadd.f32 %v62, %v136
    %138 = vdwg.mxu0
    %vm139 = vcmask 31744
    %v141 = vsel %vm139, %v56, 0
    %vm143 = vcmask 1043456
    %v145 = vsel %vm143, %v135, 0
    %v148 = vsel %vm143, %v137, 0
    %150 = vmatprep.subr.mxu0 0.0
    %151 = vmatpush1.msra.mxu0 0.0
    %152 = vmatprep.subr.mxu0 0.0
    %153 = vmatpush1.msra.mxu0 0.0
    %154 = vmatprep.subr.mxu0 0.0
    %155 = vmatpush1.msra.mxu0 0.0
    %156 = vmatprep.subr.mxu0 0.0
    %157 = vmatpush1.msra.mxu0 0.0
    %158 = vmatprep.subr.mxu0 0.0
    %159 = vmatpush1.msra.mxu0 0.0
    %160 = vmatprep.subr.mxu0 0.0
    %161 = vmatpush1.msra.mxu0 0.0
    %162 = vmatprep.subr.mxu0 0.0
    %163 = vmatpush1.msra.mxu0 0.0
    %164 = vmatprep.subr.mxu0 0.0
    %165 = vmatpush1.msra.mxu0 0.0
    %166 = vmatprep.subr.mxu0 0.0
    %167 = vmatpush1.msra.mxu0 0.0
    %168 = vmatprep.subr.mxu0 0.0
    %169 = vmatpush1.msra.mxu0 0.0
    %170 = vmatprep.subr.mxu0 0.0
    %171 = vmatpush1.msra.mxu0 0.0
    %172 = vmatprep.subr.mxu0 0.0
    %173 = vmatpush1.msra.mxu0 0.0
    %174 = vmatprep.subr.mxu0 0.0
    %175 = vmatpush1.msra.mxu0 0.0
    %176 = vmatprep.subr.mxu0 0.0
    %177 = vmatpush1.msra.mxu0 0.0
    %178 = vmatprep.subr.mxu0 0.0
    %179 = vmatpush1.msra.mxu0 0.0
    %180 = vmatprep.subr.mxu0 %v148
    %181 = vmatpush1.msra.mxu0 %v145
    %182 = vmatprep.subr.mxu0 0.0
    %183 = vmatpush2.msra.mxu0 0.0
    %184 = vmatprep.subr.mxu0 0.0
    %185 = vmatpush2.msra.mxu0 0.0
    %186 = vmatprep.subr.mxu0 0.0
    %187 = vmatpush2.msra.mxu0 0.0
    %188 = vmatprep.subr.mxu0 0.0
    %189 = vmatpush2.msra.mxu0 0.0
    %190 = vmatprep.subr.mxu0 0.0
    %191 = vmatpush2.msra.mxu0 0.0
    %192 = vmatprep.subr.mxu0 0.0
    %193 = vmatpush2.msra.mxu0 0.0
    %194 = vmatprep.subr.mxu0 0.0
    %195 = vmatpush2.msra.mxu0 0.0
    %196 = vmatprep.subr.mxu0 0.0
    %197 = vmatpush2.msra.mxu0 0.0
    %198 = vmatprep.subr.mxu0 0.0
    %199 = vmatpush2.msra.mxu0 0.0
    %200 = vmatprep.subr.mxu0 0.0
    %201 = vmatpush2.msra.mxu0 0.0
    %202 = vmatprep.subr.mxu0 0.0
    %203 = vmatpush2.msra.mxu0 0.0
    %204 = vmatprep.subr.mxu0 0.0
    %205 = vmatpush2.msra.mxu0 0.0
    %206 = vmatprep.subr.mxu0 0.0
    %207 = vmatpush2.msra.mxu0 0.0
    %208 = vmatprep.subr.mxu0 0.0
    %209 = vmatpush2.msra.mxu0 0.0
    %210 = vmatprep.subr.mxu0 0.0
    %211 = vmatpush2.msra.mxu0 0.0
    %212 = vmatprep.subr.mxu0 0.0
    %213 = vmatpush2.msra.mxu0 0.0
    %214 = vmatprep.mubr.f32.mxu0 0.0
    %215 = vmatmul.mubr.f32.gmra.mxu0 %v141
    %v216 = vpop.f32.mrf.mxu0
    %v217 = vadd.f32 0.0, %v216
    %v218 = vpop.f32.mrf.mxu0
    %v219 = vadd.f32 0.0, %v218
    %220 = vdwg.mxu0
    %v221 = vsel %vm143, %v217, 0.0
    %v222 = vsel %vm143, %v219, 0.0
    %v223 = vadd.f32 %v221, %v222
    %224 = vadd.xlane.f32.xlu0 %v223
    %v225 = vpop.xlane.xlu0 %224
    %v226 = vrcp.pop 256.0
    %v227 = vmul.f32 %v225, %v226
    %v228 = vsub.f32 %v135, %v227
    %v229 = vsub.f32 %v137, %v227
    %v230 = vmul.f32 %v228, %v228
    %v231 = vmul.f32 %v229, %v229
    %v233 = vsel %vm143, %v230, 0
    %v236 = vsel %vm143, %v231, 0
    %238 = vmatprep.subr.mxu0 0.0
    %239 = vmatpush1.msra.mxu0 0.0
    %240 = vmatprep.subr.mxu0 0.0
    %241 = vmatpush1.msra.mxu0 0.0
    %242 = vmatprep.subr.mxu0 0.0
    %243 = vmatpush1.msra.mxu0 0.0
    %244 = vmatprep.subr.mxu0 0.0
    %245 = vmatpush1.msra.mxu0 0.0
    %246 = vmatprep.subr.mxu0 0.0
    %247 = vmatpush1.msra.mxu0 0.0
    %248 = vmatprep.subr.mxu0 0.0
    %249 = vmatpush1.msra.mxu0 0.0
    %250 = vmatprep.subr.mxu0 0.0
    %251 = vmatpush1.msra.mxu0 0.0
    %252 = vmatprep.subr.mxu0 0.0
    %253 = vmatpush1.msra.mxu0 0.0
    %254 = vmatprep.subr.mxu0 0.0
    %255 = vmatpush1.msra.mxu0 0.0
    %256 = vmatprep.subr.mxu0 0.0
    %257 = vmatpush1.msra.mxu0 0.0
    %258 = vmatprep.subr.mxu0 0.0
    %259 = vmatpush1.msra.mxu0 0.0
    %260 = vmatprep.subr.mxu0 0.0
    %261 = vmatpush1.msra.mxu0 0.0
    %262 = vmatprep.subr.mxu0 0.0
    %263 = vmatpush1.msra.mxu0 0.0
    %264 = vmatprep.subr.mxu0 0.0
    %265 = vmatpush1.msra.mxu0 0.0
    %266 = vmatprep.subr.mxu0 0.0
    %267 = vmatpush1.msra.mxu0 0.0
    %268 = vmatprep.subr.mxu0 %v236
    %269 = vmatpush1.msra.mxu0 %v233
    %270 = vmatprep.subr.mxu0 0.0
    %271 = vmatpush2.msra.mxu0 0.0
    %272 = vmatprep.subr.mxu0 0.0
    %273 = vmatpush2.msra.mxu0 0.0
    %274 = vmatprep.subr.mxu0 0.0
    %275 = vmatpush2.msra.mxu0 0.0
    %276 = vmatprep.subr.mxu0 0.0
    %277 = vmatpush2.msra.mxu0 0.0
    %278 = vmatprep.subr.mxu0 0.0
    %279 = vmatpush2.msra.mxu0 0.0
    %280 = vmatprep.subr.mxu0 0.0
    %281 = vmatpush2.msra.mxu0 0.0
    %282 = vmatprep.subr.mxu0 0.0
    %283 = vmatpush2.msra.mxu0 0.0
    %284 = vmatprep.subr.mxu0 0.0
    %285 = vmatpush2.msra.mxu0 0.0
    %286 = vmatprep.subr.mxu0 0.0
    %287 = vmatpush2.msra.mxu0 0.0
    %288 = vmatprep.subr.mxu0 0.0
    %289 = vmatpush2.msra.mxu0 0.0
    %290 = vmatprep.subr.mxu0 0.0
    %291 = vmatpush2.msra.mxu0 0.0
    %292 = vmatprep.subr.mxu0 0.0
    %293 = vmatpush2.msra.mxu0 0.0
    %294 = vmatprep.subr.mxu0 0.0
    %295 = vmatpush2.msra.mxu0 0.0
    %296 = vmatprep.subr.mxu0 0.0
    %297 = vmatpush2.msra.mxu0 0.0
    %298 = vmatprep.subr.mxu0 0.0
    %299 = vmatpush2.msra.mxu0 0.0
    %300 = vmatprep.subr.mxu0 0.0
    %301 = vmatpush2.msra.mxu0 0.0
    %302 = vmatprep.mubr.f32.mxu0 0.0
    %303 = vmatmul.mubr.f32.gmra.mxu0 %v141
    %v304 = vpop.f32.mrf.mxu0
    %v305 = vadd.f32 0.0, %v304
    %v306 = vpop.f32.mrf.mxu0
    %v307 = vadd.f32 0.0, %v306
    %308 = vdwg.mxu0
    %v309 = vsel %vm143, %v305, 0.0
    %v310 = vsel %vm143, %v307, 0.0
    %v311 = vadd.f32 %v309, %v310
    %312 = vadd.xlane.f32.xlu0 %v311
    %v313 = vpop.xlane.xlu0 %312
    %v314 = vmul.f32 %v313, %v226
    %v315 = vld [vmem:[%s3] sm:$0xf]
    %v316 = vadd.f32 %v314, 1e-05
    %v317 = vrsqrt.pop %v316
    %v318 = vmul.f32 %v315, %v317
    %320 = vset.pattern.permute.xlu0 0
    %321 = vperm.xlu0 %320, %v318
    %v322 = vpop.permute.xlu0 %321
    %v324 = vmul.f32 %v228, %v322
    %v325 = vmul.f32 %v229, %v322
    %v326 = vld [vmem:[%s4] sm:$0xf]
    %328 = vset.pattern.permute.xlu0 0
    %329 = vperm.xlu0 %328, %v326
    %v330 = vpop.permute.xlu0 %329
    %v332 = vadd.f32 %v324, %v330
    %v333 = vadd.f32 %v325, %v330
    %vm334 = vcmp.gt.f32.partialorder %v332, 0.0
    %vm335 = vcmp.gt.f32.partialorder %v333, 0.0
    %v336 = vld [vmem:[%s5] sm:$0xf]
    %338 = vset.pattern.permute.xlu0 0
    %339 = vperm.xlu0 %338, %v336
    %v340 = vpop.permute.xlu0 %339
    %v342 = vmul.f32 %v340, %v332
    %v343 = vmul.f32 %v340, %v333
    %v344 = vsel %vm334, %v332, %v342
    %v345 = vsel %vm335, %v333, %v343
    %v346 = vld [vmem:[%s14] sm:$0xff]
    %v347 = vld [vmem:[%s14 + $0x8] sm:$0xff]
    %v348 = vld [vmem:[%s14 + $0x10] sm:$0xff]
    %v349 = vld [vmem:[%s14 + $0x18] sm:$0xff]
    %v350 = vld [vmem:[%s14 + $0x20] sm:$0xff]
    %v351 = vld [vmem:[%s14 + $0x28] sm:$0xff]
    %v352 = vld [vmem:[%s14 + $0x30] sm:$0xff]
    %v353 = vld [vmem:[%s14 + $0x38] sm:$0xff]
    %v354 = vld [vmem:[%s14 + $0x40] sm:$0xff]
    %v355 = vld [vmem:[%s14 + $0x48] sm:$0xff]
    %v356 = vld [vmem:[%s14 + $0x50] sm:$0xff]
    %v357 = vld [vmem:[%s14 + $0x58] sm:$0xff]
    %v358 = vld [vmem:[%s14 + $0x60] sm:$0xff]
    %v359 = vld [vmem:[%s14 + $0x68] sm:$0xff]
    %v360 = vld [vmem:[%s14 + $0x70] sm:$0xff]
    %v361 = vld [vmem:[%s14 + $0x78] sm:$0xff]
    %v362 = vld [vmem:[%s14 + $0x80] sm:$0xff]
    %v363 = vld [vmem:[%s14 + $0x88] sm:$0xff]
    %v364 = vld [vmem:[%s14 + $0x90] sm:$0xff]
    %v365 = vld [vmem:[%s14 + $0x98] sm:$0xff]
    %v366 = vld [vmem:[%s14 + $0xa0] sm:$0xff]
    %v367 = vld [vmem:[%s14 + $0xa8] sm:$0xff]
    %v368 = vld [vmem:[%s14 + $0xb0] sm:$0xff]
    %v369 = vld [vmem:[%s14 + $0xb8] sm:$0xff]
    %v370 = vld [vmem:[%s14 + $0xc0] sm:$0xff]
    %v371 = vld [vmem:[%s14 + $0xc8] sm:$0xff]
    %v372 = vld [vmem:[%s14 + $0xd0] sm:$0xff]
    %v373 = vld [vmem:[%s14 + $0xd8] sm:$0xff]
    %v374 = vld [vmem:[%s14 + $0xe0] sm:$0xff]
    %v375 = vld [vmem:[%s14 + $0xe8] sm:$0xff]
    %v376 = vld [vmem:[%s14 + $0xf0] sm:$0xff]
    %v377 = vld [vmem:[%s14 + $0xf8] sm:$0xff]
    %v378 = vld [vmem:[%s14 + $0x100] sm:$0xff]
    %v379 = vld [vmem:[%s14 + $0x108] sm:$0xff]
    %v380 = vld [vmem:[%s14 + $0x110] sm:$0xff]
    %v381 = vld [vmem:[%s14 + $0x118] sm:$0xff]
    %v382 = vld [vmem:[%s14 + $0x120] sm:$0xff]
    %v383 = vld [vmem:[%s14 + $0x128] sm:$0xff]
    %v384 = vld [vmem:[%s14 + $0x130] sm:$0xff]
    %v385 = vld [vmem:[%s14 + $0x138] sm:$0xff]
    %v386 = vld [vmem:[%s14 + $0x140] sm:$0xff]
    %v387 = vld [vmem:[%s14 + $0x148] sm:$0xff]
    %v388 = vld [vmem:[%s14 + $0x150] sm:$0xff]
    %v389 = vld [vmem:[%s14 + $0x158] sm:$0xff]
    %v390 = vld [vmem:[%s14 + $0x160] sm:$0xff]
    %v391 = vld [vmem:[%s14 + $0x168] sm:$0xff]
    %v392 = vld [vmem:[%s14 + $0x170] sm:$0xff]
    %v393 = vld [vmem:[%s14 + $0x178] sm:$0xff]
    %v394 = vld [vmem:[%s14 + $0x180] sm:$0xff]
    %v395 = vld [vmem:[%s14 + $0x188] sm:$0xff]
    %v396 = vld [vmem:[%s14 + $0x190] sm:$0xff]
    %v397 = vld [vmem:[%s14 + $0x198] sm:$0xff]
    %v398 = vld [vmem:[%s14 + $0x1a0] sm:$0xff]
    %v399 = vld [vmem:[%s14 + $0x1a8] sm:$0xff]
    %v400 = vld [vmem:[%s14 + $0x1b0] sm:$0xff]
    %v401 = vld [vmem:[%s14 + $0x1b8] sm:$0xff]
    %v402 = vld [vmem:[%s14 + $0x1c0] sm:$0xff]
    %v403 = vld [vmem:[%s14 + $0x1c8] sm:$0xff]
    %v404 = vld [vmem:[%s14 + $0x1d0] sm:$0xff]
    %v405 = vld [vmem:[%s14 + $0x1d8] sm:$0xff]
    %v406 = vld [vmem:[%s14 + $0x1e0] sm:$0xff]
    %v407 = vld [vmem:[%s14 + $0x1e8] sm:$0xff]
    %v408 = vld [vmem:[%s14 + $0x1f0] sm:$0xff]
    %v409 = vld [vmem:[%s14 + $0x1f8] sm:$0xff]
    %v410 = vld [vmem:[%s14 + $0x200] sm:$0xff]
    %v411 = vld [vmem:[%s14 + $0x208] sm:$0xff]
    %v412 = vld [vmem:[%s14 + $0x210] sm:$0xff]
    %v413 = vld [vmem:[%s14 + $0x218] sm:$0xff]
    %v414 = vld [vmem:[%s14 + $0x220] sm:$0xff]
    %v415 = vld [vmem:[%s14 + $0x228] sm:$0xff]
    %v416 = vld [vmem:[%s14 + $0x230] sm:$0xff]
    %v417 = vld [vmem:[%s14 + $0x238] sm:$0xff]
    %v418 = vld [vmem:[%s14 + $0x240] sm:$0xff]
    %v419 = vld [vmem:[%s14 + $0x248] sm:$0xff]
    %v420 = vld [vmem:[%s14 + $0x250] sm:$0xff]
    %v421 = vld [vmem:[%s14 + $0x258] sm:$0xff]
    %v422 = vld [vmem:[%s14 + $0x260] sm:$0xff]
    %v423 = vld [vmem:[%s14 + $0x268] sm:$0xff]
    %v424 = vld [vmem:[%s14 + $0x270] sm:$0xff]
    %v425 = vld [vmem:[%s14 + $0x278] sm:$0xff]
    %v426 = vld [vmem:[%s14 + $0x280] sm:$0xff]
    %v427 = vld [vmem:[%s14 + $0x288] sm:$0xff]
    %v428 = vld [vmem:[%s14 + $0x290] sm:$0xff]
    %v429 = vld [vmem:[%s14 + $0x298] sm:$0xff]
    %v430 = vld [vmem:[%s14 + $0x2a0] sm:$0xff]
    %v431 = vld [vmem:[%s14 + $0x2a8] sm:$0xff]
    %v432 = vld [vmem:[%s14 + $0x2b0] sm:$0xff]
    %v433 = vld [vmem:[%s14 + $0x2b8] sm:$0xff]
    %v434 = vld [vmem:[%s14 + $0x2c0] sm:$0xff]
    %v435 = vld [vmem:[%s14 + $0x2c8] sm:$0xff]
    %v436 = vld [vmem:[%s14 + $0x2d0] sm:$0xff]
    %v437 = vld [vmem:[%s14 + $0x2d8] sm:$0xff]
    %v438 = vld [vmem:[%s14 + $0x2e0] sm:$0xff]
    %v439 = vld [vmem:[%s14 + $0x2e8] sm:$0xff]
    %v440 = vld [vmem:[%s14 + $0x2f0] sm:$0xff]
    %v441 = vld [vmem:[%s14 + $0x2f8] sm:$0xff]
    %442 = vmatprep.subr.mxu0 %v392
    %443 = vmatpush1.msra.mxu0 %v391
    %444 = vmatprep.subr.mxu0 %v389
    %445 = vmatpush1.msra.mxu0 %v388
    %446 = vmatprep.subr.mxu0 %v386
    %447 = vmatpush1.msra.mxu0 %v385
    %448 = vmatprep.subr.mxu0 %v383
    %449 = vmatpush1.msra.mxu0 %v382
    %450 = vmatprep.subr.mxu0 %v380
    %451 = vmatpush1.msra.mxu0 %v379
    %452 = vmatprep.subr.mxu0 %v377
    %453 = vmatpush1.msra.mxu0 %v376
    %454 = vmatprep.subr.mxu0 %v374
    %455 = vmatpush1.msra.mxu0 %v373
    %456 = vmatprep.subr.mxu0 %v371
    %457 = vmatpush1.msra.mxu0 %v370
    %458 = vmatprep.subr.mxu0 %v368
    %459 = vmatpush1.msra.mxu0 %v367
    %460 = vmatprep.subr.mxu0 %v365
    %461 = vmatpush1.msra.mxu0 %v364
    %462 = vmatprep.subr.mxu0 %v362
    %463 = vmatpush1.msra.mxu0 %v361
    %464 = vmatprep.subr.mxu0 %v359
    %465 = vmatpush1.msra.mxu0 %v358
    %466 = vmatprep.subr.mxu0 %v356
    %467 = vmatpush1.msra.mxu0 %v355
    %468 = vmatprep.subr.mxu0 %v353
    %469 = vmatpush1.msra.mxu0 %v352
    %470 = vmatprep.subr.mxu0 %v350
    %471 = vmatpush1.msra.mxu0 %v349
    %472 = vmatprep.subr.mxu0 %v347
    %473 = vmatpush1.msra.mxu0 %v346
    %474 = vmatprep.subr.mxu0 %v440
    %475 = vmatpush2.msra.mxu0 %v439
    %476 = vmatprep.subr.mxu0 %v437
    %477 = vmatpush2.msra.mxu0 %v436
    %478 = vmatprep.subr.mxu0 %v434
    %479 = vmatpush2.msra.mxu0 %v433
    %480 = vmatprep.subr.mxu0 %v431
    %481 = vmatpush2.msra.mxu0 %v430
    %482 = vmatprep.subr.mxu0 %v428
    %483 = vmatpush2.msra.mxu0 %v427
    %484 = vmatprep.subr.mxu0 %v425
    %485 = vmatpush2.msra.mxu0 %v424
    %486 = vmatprep.subr.mxu0 %v422
    %487 = vmatpush2.msra.mxu0 %v421
    %488 = vmatprep.subr.mxu0 %v419
    %489 = vmatpush2.msra.mxu0 %v418
    %490 = vmatprep.subr.mxu0 %v416
    %491 = vmatpush2.msra.mxu0 %v415
    %492 = vmatprep.subr.mxu0 %v413
    %493 = vmatpush2.msra.mxu0 %v412
    %494 = vmatprep.subr.mxu0 %v410
    %495 = vmatpush2.msra.mxu0 %v409
    %496 = vmatprep.subr.mxu0 %v407
    %497 = vmatpush2.msra.mxu0 %v406
    %498 = vmatprep.subr.mxu0 %v404
    %499 = vmatpush2.msra.mxu0 %v403
    %500 = vmatprep.subr.mxu0 %v401
    %501 = vmatpush2.msra.mxu0 %v400
    %502 = vmatprep.subr.mxu0 %v398
    %503 = vmatpush2.msra.mxu0 %v397
    %504 = vmatprep.subr.mxu0 %v395
    %505 = vmatpush2.msra.mxu0 %v394
    %506 = vmatprep.mubr.f32.mxu0 %v345
    %507 = vmatmul.mubr.f32.gmra.mxu0 %v344
    %v508 = vpop.f32.mrf.mxu0
    %v509 = vadd.f32 0.0, %v508
    %v510 = vpop.f32.mrf.mxu0
    %v511 = vadd.f32 0.0, %v510
    %512 = vdwg.mxu0
    %513 = vmatprep.subr.mxu0 0.0
    %514 = vmatpush1.msra.mxu0 %v393
    %515 = vmatprep.subr.mxu0 0.0
    %516 = vmatpush1.msra.mxu0 %v390
    %517 = vmatprep.subr.mxu0 0.0
    %518 = vmatpush1.msra.mxu0 %v387
    %519 = vmatprep.subr.mxu0 0.0
    %520 = vmatpush1.msra.mxu0 %v384
    %521 = vmatprep.subr.mxu0 0.0
    %522 = vmatpush1.msra.mxu0 %v381
    %523 = vmatprep.subr.mxu0 0.0
    %524 = vmatpush1.msra.mxu0 %v378
    %525 = vmatprep.subr.mxu0 0.0
    %526 = vmatpush1.msra.mxu0 %v375
    %527 = vmatprep.subr.mxu0 0.0
    %528 = vmatpush1.msra.mxu0 %v372
    %529 = vmatprep.subr.mxu0 0.0
    %530 = vmatpush1.msra.mxu0 %v369
    %531 = vmatprep.subr.mxu0 0.0
    %532 = vmatpush1.msra.mxu0 %v366
    %533 = vmatprep.subr.mxu0 0.0
    %534 = vmatpush1.msra.mxu0 %v363
    %535 = vmatprep.subr.mxu0 0.0
    %536 = vmatpush1.msra.mxu0 %v360
    %537 = vmatprep.subr.mxu0 0.0
    %538 = vmatpush1.msra.mxu0 %v357
    %539 = vmatprep.subr.mxu0 0.0
    %540 = vmatpush1.msra.mxu0 %v354
    %541 = vmatprep.subr.mxu0 0.0
    %542 = vmatpush1.msra.mxu0 %v351
    %543 = vmatprep.subr.mxu0 0.0
    %544 = vmatpush1.msra.mxu0 %v348
    %545 = vmatprep.subr.mxu0 0.0
    %546 = vmatpush2.msra.mxu0 %v441
    %547 = vmatprep.subr.mxu0 0.0
    %548 = vmatpush2.msra.mxu0 %v438
    %549 = vmatprep.subr.mxu0 0.0
    %550 = vmatpush2.msra.mxu0 %v435
    %551 = vmatprep.subr.mxu0 0.0
    %552 = vmatpush2.msra.mxu0 %v432
    %553 = vmatprep.subr.mxu0 0.0
    %554 = vmatpush2.msra.mxu0 %v429
    %555 = vmatprep.subr.mxu0 0.0
    %556 = vmatpush2.msra.mxu0 %v426
    %557 = vmatprep.subr.mxu0 0.0
    %558 = vmatpush2.msra.mxu0 %v423
    %559 = vmatprep.subr.mxu0 0.0
    %560 = vmatpush2.msra.mxu0 %v420
    %561 = vmatprep.subr.mxu0 0.0
    %562 = vmatpush2.msra.mxu0 %v417
    %563 = vmatprep.subr.mxu0 0.0
    %564 = vmatpush2.msra.mxu0 %v414
    %565 = vmatprep.subr.mxu0 0.0
    %566 = vmatpush2.msra.mxu0 %v411
    %567 = vmatprep.subr.mxu0 0.0
    %568 = vmatpush2.msra.mxu0 %v408
    %569 = vmatprep.subr.mxu0 0.0
    %570 = vmatpush2.msra.mxu0 %v405
    %571 = vmatprep.subr.mxu0 0.0
    %572 = vmatpush2.msra.mxu0 %v402
    %573 = vmatprep.subr.mxu0 0.0
    %574 = vmatpush2.msra.mxu0 %v399
    %575 = vmatprep.subr.mxu0 0.0
    %576 = vmatpush2.msra.mxu0 %v396
    %577 = vmatprep.mubr.f32.mxu0 %v345
    %578 = vmatmul.mubr.f32.gmra.mxu0 %v344
    %v579 = vpop.f32.mrf.mxu0
    %v580 = vadd.f32 0.0, %v579
    %v581 = vpop.f32.mrf.mxu0
    %582 = vdwg.mxu0
    %v583 = vld [vmem:[%s6] sm:$0xf]
    %v584 = vld [vmem:[%s7] sm:$0xf]
    %586 = vset.pattern.permute.xlu0 0
    %587 = vperm.xlu0 %586, %v584
    %v588 = vpop.permute.xlu0 %587
    %v591 = vsel %vm139, %v583, 0
    %v594 = vsel %vm143, %v509, 0
    %v597 = vsel %vm143, %v511, 0
    %v600 = vsel %vm143, %v580, 0
    %602 = vmatprep.subr.mxu0 0.0
    %603 = vmatpush1.msra.mxu0 0.0
    %604 = vmatprep.subr.mxu0 0.0
    %605 = vmatpush1.msra.mxu0 0.0
    %606 = vmatprep.subr.mxu0 0.0
    %607 = vmatpush1.msra.mxu0 0.0
    %608 = vmatprep.subr.mxu0 0.0
    %609 = vmatpush1.msra.mxu0 0.0
    %610 = vmatprep.subr.mxu0 0.0
    %611 = vmatpush1.msra.mxu0 0.0
    %612 = vmatprep.subr.mxu0 0.0
    %613 = vmatpush1.msra.mxu0 0.0
    %614 = vmatprep.subr.mxu0 0.0
    %615 = vmatpush1.msra.mxu0 0.0
    %616 = vmatprep.subr.mxu0 0.0
    %617 = vmatpush1.msra.mxu0 0.0
    %618 = vmatprep.subr.mxu0 0.0
    %619 = vmatpush1.msra.mxu0 0.0
    %620 = vmatprep.subr.mxu0 0.0
    %621 = vmatpush1.msra.mxu0 0.0
    %622 = vmatprep.subr.mxu0 0.0
    %623 = vmatpush1.msra.mxu0 0.0
    %624 = vmatprep.subr.mxu0 0.0
    %625 = vmatpush1.msra.mxu0 0.0
    %626 = vmatprep.subr.mxu0 0.0
    %627 = vmatpush1.msra.mxu0 0.0
    %628 = vmatprep.subr.mxu0 0.0
    %629 = vmatpush1.msra.mxu0 0.0
    %630 = vmatprep.subr.mxu0 0.0
    %631 = vmatpush1.msra.mxu0 0.0
    %632 = vmatprep.subr.mxu0 %v597
    %633 = vmatpush1.msra.mxu0 %v594
    %634 = vmatprep.subr.mxu0 0.0
    %635 = vmatpush2.msra.mxu0 0.0
    %636 = vmatprep.subr.mxu0 0.0
    %637 = vmatpush2.msra.mxu0 0.0
    %638 = vmatprep.subr.mxu0 0.0
    %639 = vmatpush2.msra.mxu0 0.0
    %640 = vmatprep.subr.mxu0 0.0
    %641 = vmatpush2.msra.mxu0 0.0
    %642 = vmatprep.subr.mxu0 0.0
    %643 = vmatpush2.msra.mxu0 0.0
    %644 = vmatprep.subr.mxu0 0.0
    %645 = vmatpush2.msra.mxu0 0.0
    %646 = vmatprep.subr.mxu0 0.0
    %647 = vmatpush2.msra.mxu0 0.0
    %648 = vmatprep.subr.mxu0 0.0
    %649 = vmatpush2.msra.mxu0 0.0
    %650 = vmatprep.subr.mxu0 0.0
    %651 = vmatpush2.msra.mxu0 0.0
    %652 = vmatprep.subr.mxu0 0.0
    %653 = vmatpush2.msra.mxu0 0.0
    %654 = vmatprep.subr.mxu0 0.0
    %655 = vmatpush2.msra.mxu0 0.0
    %656 = vmatprep.subr.mxu0 0.0
    %657 = vmatpush2.msra.mxu0 0.0
    %658 = vmatprep.subr.mxu0 0.0
    %659 = vmatpush2.msra.mxu0 0.0
    %660 = vmatprep.subr.mxu0 0.0
    %661 = vmatpush2.msra.mxu0 0.0
    %662 = vmatprep.subr.mxu0 0.0
    %663 = vmatpush2.msra.mxu0 0.0
    %664 = vmatprep.subr.mxu0 0.0
    %665 = vmatpush2.msra.mxu0 0.0
    %666 = vmatprep.mubr.f32.mxu0 0.0
    %667 = vmatmul.mubr.f32.gmra.mxu0 %v591
    %v668 = vpop.f32.mrf.mxu0
    %v669 = vadd.f32 %v588, %v668
    %v670 = vpop.f32.mrf.mxu0
    %v671 = vadd.f32 %v588, %v670
    %672 = vdwg.mxu0
    %673 = vmatprep.subr.mxu0 0.0
    %674 = vmatpush1.msra.mxu0 0.0
    %675 = vmatprep.subr.mxu0 0.0
    %676 = vmatpush1.msra.mxu0 0.0
    %677 = vmatprep.subr.mxu0 0.0
    %678 = vmatpush1.msra.mxu0 0.0
    %679 = vmatprep.subr.mxu0 0.0
    %680 = vmatpush1.msra.mxu0 0.0
    %681 = vmatprep.subr.mxu0 0.0
    %682 = vmatpush1.msra.mxu0 0.0
    %683 = vmatprep.subr.mxu0 0.0
    %684 = vmatpush1.msra.mxu0 0.0
    %685 = vmatprep.subr.mxu0 0.0
    %686 = vmatpush1.msra.mxu0 0.0
    %687 = vmatprep.subr.mxu0 0.0
    %688 = vmatpush1.msra.mxu0 0.0
    %689 = vmatprep.subr.mxu0 0.0
    %690 = vmatpush1.msra.mxu0 0.0
    %691 = vmatprep.subr.mxu0 0.0
    %692 = vmatpush1.msra.mxu0 0.0
    %693 = vmatprep.subr.mxu0 0.0
    %694 = vmatpush1.msra.mxu0 0.0
    %695 = vmatprep.subr.mxu0 0.0
    %696 = vmatpush1.msra.mxu0 0.0
    %697 = vmatprep.subr.mxu0 0.0
    %698 = vmatpush1.msra.mxu0 0.0
    %699 = vmatprep.subr.mxu0 0.0
    %700 = vmatpush1.msra.mxu0 0.0
    %701 = vmatprep.subr.mxu0 0.0
    %702 = vmatpush1.msra.mxu0 0.0
    %703 = vmatprep.subr.mxu0 0.0
    %704 = vmatpush1.msra.mxu0 %v600
    %705 = vmatprep.subr.mxu0 0.0
    %706 = vmatpush2.msra.mxu0 0.0
    %707 = vmatprep.subr.mxu0 0.0
    %708 = vmatpush2.msra.mxu0 0.0
    %709 = vmatprep.subr.mxu0 0.0
    %710 = vmatpush2.msra.mxu0 0.0
    %711 = vmatprep.subr.mxu0 0.0
    %712 = vmatpush2.msra.mxu0 0.0
    %713 = vmatprep.subr.mxu0 0.0
    %714 = vmatpush2.msra.mxu0 0.0
    %715 = vmatprep.subr.mxu0 0.0
    %716 = vmatpush2.msra.mxu0 0.0
    %717 = vmatprep.subr.mxu0 0.0
    %718 = vmatpush2.msra.mxu0 0.0
    %719 = vmatprep.subr.mxu0 0.0
    %720 = vmatpush2.msra.mxu0 0.0
    %721 = vmatprep.subr.mxu0 0.0
    %722 = vmatpush2.msra.mxu0 0.0
    %723 = vmatprep.subr.mxu0 0.0
    %724 = vmatpush2.msra.mxu0 0.0
    %725 = vmatprep.subr.mxu0 0.0
    %726 = vmatpush2.msra.mxu0 0.0
    %727 = vmatprep.subr.mxu0 0.0
    %728 = vmatpush2.msra.mxu0 0.0
    %729 = vmatprep.subr.mxu0 0.0
    %730 = vmatpush2.msra.mxu0 0.0
    %731 = vmatprep.subr.mxu0 0.0
    %732 = vmatpush2.msra.mxu0 0.0
    %733 = vmatprep.subr.mxu0 0.0
    %734 = vmatpush2.msra.mxu0 0.0
    %735 = vmatprep.subr.mxu0 0.0
    %736 = vmatpush2.msra.mxu0 0.0
    %737 = vmatprep.mubr.f32.mxu0 0.0
    %738 = vmatmul.mubr.f32.gmra.mxu0 %v591
    %v739 = vpop.f32.mrf.mxu0
    %v740 = vadd.f32 %v588, %v739
    %v741 = vpop.f32.mrf.mxu0
    %742 = vdwg.mxu0
    %v744 = vsel %vm143, %v669, 0
    %v747 = vsel %vm143, %v671, 0
    %v750 = vsel %vm143, %v740, 0
    %752 = vmatprep.subr.mxu0 0.0
    %753 = vmatpush1.msra.mxu0 0.0
    %754 = vmatprep.subr.mxu0 0.0
    %755 = vmatpush1.msra.mxu0 0.0
    %756 = vmatprep.subr.mxu0 0.0
    %757 = vmatpush1.msra.mxu0 0.0
    %758 = vmatprep.subr.mxu0 0.0
    %759 = vmatpush1.msra.mxu0 0.0
    %760 = vmatprep.subr.mxu0 0.0
    %761 = vmatpush1.msra.mxu0 0.0
    %762 = vmatprep.subr.mxu0 0.0
    %763 = vmatpush1.msra.mxu0 0.0
    %764 = vmatprep.subr.mxu0 0.0
    %765 = vmatpush1.msra.mxu0 0.0
    %766 = vmatprep.subr.mxu0 0.0
    %767 = vmatpush1.msra.mxu0 0.0
    %768 = vmatprep.subr.mxu0 0.0
    %769 = vmatpush1.msra.mxu0 0.0
    %770 = vmatprep.subr.mxu0 0.0
    %771 = vmatpush1.msra.mxu0 0.0
    %772 = vmatprep.subr.mxu0 0.0
    %773 = vmatpush1.msra.mxu0 0.0
    %774 = vmatprep.subr.mxu0 0.0
    %775 = vmatpush1.msra.mxu0 0.0
    %776 = vmatprep.subr.mxu0 0.0
    %777 = vmatpush1.msra.mxu0 0.0
    %778 = vmatprep.subr.mxu0 0.0
    %779 = vmatpush1.msra.mxu0 0.0
    %780 = vmatprep.subr.mxu0 0.0
    %781 = vmatpush1.msra.mxu0 0.0
    %782 = vmatprep.subr.mxu0 %v747
    %783 = vmatpush1.msra.mxu0 %v744
    %784 = vmatprep.subr.mxu0 0.0
    %785 = vmatpush2.msra.mxu0 0.0
    %786 = vmatprep.subr.mxu0 0.0
    %787 = vmatpush2.msra.mxu0 0.0
    %788 = vmatprep.subr.mxu0 0.0
    %789 = vmatpush2.msra.mxu0 0.0
    %790 = vmatprep.subr.mxu0 0.0
    %791 = vmatpush2.msra.mxu0 0.0
    %792 = vmatprep.subr.mxu0 0.0
    %793 = vmatpush2.msra.mxu0 0.0
    %794 = vmatprep.subr.mxu0 0.0
    %795 = vmatpush2.msra.mxu0 0.0
    %796 = vmatprep.subr.mxu0 0.0
    %797 = vmatpush2.msra.mxu0 0.0
    %798 = vmatprep.subr.mxu0 0.0
    %799 = vmatpush2.msra.mxu0 0.0
    %800 = vmatprep.subr.mxu0 0.0
    %801 = vmatpush2.msra.mxu0 0.0
    %802 = vmatprep.subr.mxu0 0.0
    %803 = vmatpush2.msra.mxu0 0.0
    %804 = vmatprep.subr.mxu0 0.0
    %805 = vmatpush2.msra.mxu0 0.0
    %806 = vmatprep.subr.mxu0 0.0
    %807 = vmatpush2.msra.mxu0 0.0
    %808 = vmatprep.subr.mxu0 0.0
    %809 = vmatpush2.msra.mxu0 0.0
    %810 = vmatprep.subr.mxu0 0.0
    %811 = vmatpush2.msra.mxu0 0.0
    %812 = vmatprep.subr.mxu0 0.0
    %813 = vmatpush2.msra.mxu0 0.0
    %814 = vmatprep.subr.mxu0 0.0
    %815 = vmatpush2.msra.mxu0 0.0
    %816 = vmatprep.mubr.f32.mxu0 0.0
    %817 = vmatmul.mubr.f32.gmra.mxu0 %v141
    %v818 = vpop.f32.mrf.mxu0
    %v819 = vadd.f32 0.0, %v818
    %v820 = vpop.f32.mrf.mxu0
    %v821 = vadd.f32 0.0, %v820
    %822 = vdwg.mxu0
    %823 = vmatprep.subr.mxu0 0.0
    %824 = vmatpush1.msra.mxu0 0.0
    %825 = vmatprep.subr.mxu0 0.0
    %826 = vmatpush1.msra.mxu0 0.0
    %827 = vmatprep.subr.mxu0 0.0
    %828 = vmatpush1.msra.mxu0 0.0
    %829 = vmatprep.subr.mxu0 0.0
    %830 = vmatpush1.msra.mxu0 0.0
    %831 = vmatprep.subr.mxu0 0.0
    %832 = vmatpush1.msra.mxu0 0.0
    %833 = vmatprep.subr.mxu0 0.0
    %834 = vmatpush1.msra.mxu0 0.0
    %835 = vmatprep.subr.mxu0 0.0
    %836 = vmatpush1.msra.mxu0 0.0
    %837 = vmatprep.subr.mxu0 0.0
    %838 = vmatpush1.msra.mxu0 0.0
    %839 = vmatprep.subr.mxu0 0.0
    %840 = vmatpush1.msra.mxu0 0.0
    %841 = vmatprep.subr.mxu0 0.0
    %842 = vmatpush1.msra.mxu0 0.0
    %843 = vmatprep.subr.mxu0 0.0
    %844 = vmatpush1.msra.mxu0 0.0
    %845 = vmatprep.subr.mxu0 0.0
    %846 = vmatpush1.msra.mxu0 0.0
    %847 = vmatprep.subr.mxu0 0.0
    %848 = vmatpush1.msra.mxu0 0.0
    %849 = vmatprep.subr.mxu0 0.0
    %850 = vmatpush1.msra.mxu0 0.0
    %851 = vmatprep.subr.mxu0 0.0
    %852 = vmatpush1.msra.mxu0 0.0
    %853 = vmatprep.subr.mxu0 0.0
    %854 = vmatpush1.msra.mxu0 %v750
    %855 = vmatprep.subr.mxu0 0.0
    %856 = vmatpush2.msra.mxu0 0.0
    %857 = vmatprep.subr.mxu0 0.0
    %858 = vmatpush2.msra.mxu0 0.0
    %859 = vmatprep.subr.mxu0 0.0
    %860 = vmatpush2.msra.mxu0 0.0
    %861 = vmatprep.subr.mxu0 0.0
    %862 = vmatpush2.msra.mxu0 0.0
    %863 = vmatprep.subr.mxu0 0.0
    %864 = vmatpush2.msra.mxu0 0.0
    %865 = vmatprep.subr.mxu0 0.0
    %866 = vmatpush2.msra.mxu0 0.0
    %867 = vmatprep.subr.mxu0 0.0
    %868 = vmatpush2.msra.mxu0 0.0
    %869 = vmatprep.subr.mxu0 0.0
    %870 = vmatpush2.msra.mxu0 0.0
    %871 = vmatprep.subr.mxu0 0.0
    %872 = vmatpush2.msra.mxu0 0.0
    %873 = vmatprep.subr.mxu0 0.0
    %874 = vmatpush2.msra.mxu0 0.0
    %875 = vmatprep.subr.mxu0 0.0
    %876 = vmatpush2.msra.mxu0 0.0
    %877 = vmatprep.subr.mxu0 0.0
    %878 = vmatpush2.msra.mxu0 0.0
    %879 = vmatprep.subr.mxu0 0.0
    %880 = vmatpush2.msra.mxu0 0.0
    %881 = vmatprep.subr.mxu0 0.0
    %882 = vmatpush2.msra.mxu0 0.0
    %883 = vmatprep.subr.mxu0 0.0
    %884 = vmatpush2.msra.mxu0 0.0
    %885 = vmatprep.subr.mxu0 0.0
    %886 = vmatpush2.msra.mxu0 0.0
    %887 = vmatprep.mubr.f32.mxu0 0.0
    %888 = vmatmul.mubr.f32.gmra.mxu0 %v141
    %v889 = vpop.f32.mrf.mxu0
    %v890 = vadd.f32 0.0, %v889
    %v891 = vpop.f32.mrf.mxu0
    %892 = vdwg.mxu0
    %v893 = vsel %vm143, %v819, 0.0
    %v894 = vsel %vm143, %v821, 0.0
    %v895 = vadd.f32 %v893, %v894
    %vm896 = vcmask 257024
    %v897 = vsel %vm896, %v890, 0.0
    %v898 = vadd.f32 %v895, %v897
    %899 = vadd.xlane.f32.xlu0 %v898
    %v900 = vpop.xlane.xlu0 %899
    %v901 = vrcp.pop 288.0
    %v902 = vmul.f32 %v900, %v901
    %v903 = vsub.f32 %v669, %v902
    %v904 = vsub.f32 %v671, %v902
    %v905 = vsub.f32 %v740, %v902
    %v906 = vmul.f32 %v903, %v903
    %v907 = vmul.f32 %v904, %v904
    %v908 = vmul.f32 %v905, %v905
    %v910 = vsel %vm143, %v906, 0
    %v913 = vsel %vm143, %v907, 0
    %v916 = vsel %vm143, %v908, 0
    %918 = vmatprep.subr.mxu0 0.0
    %919 = vmatpush1.msra.mxu0 0.0
    %920 = vmatprep.subr.mxu0 0.0
    %921 = vmatpush1.msra.mxu0 0.0
    %922 = vmatprep.subr.mxu0 0.0
    %923 = vmatpush1.msra.mxu0 0.0
    %924 = vmatprep.subr.mxu0 0.0
    %925 = vmatpush1.msra.mxu0 0.0
    %926 = vmatprep.subr.mxu0 0.0
    %927 = vmatpush1.msra.mxu0 0.0
    %928 = vmatprep.subr.mxu0 0.0
    %929 = vmatpush1.msra.mxu0 0.0
    %930 = vmatprep.subr.mxu0 0.0
    %931 = vmatpush1.msra.mxu0 0.0
    %932 = vmatprep.subr.mxu0 0.0
    %933 = vmatpush1.msra.mxu0 0.0
    %934 = vmatprep.subr.mxu0 0.0
    %935 = vmatpush1.msra.mxu0 0.0
    %936 = vmatprep.subr.mxu0 0.0
    %937 = vmatpush1.msra.mxu0 0.0
    %938 = vmatprep.subr.mxu0 0.0
    %939 = vmatpush1.msra.mxu0 0.0
    %940 = vmatprep.subr.mxu0 0.0
    %941 = vmatpush1.msra.mxu0 0.0
    %942 = vmatprep.subr.mxu0 0.0
    %943 = vmatpush1.msra.mxu0 0.0
    %944 = vmatprep.subr.mxu0 0.0
    %945 = vmatpush1.msra.mxu0 0.0
    %946 = vmatprep.subr.mxu0 0.0
    %947 = vmatpush1.msra.mxu0 0.0
    %948 = vmatprep.subr.mxu0 %v913
    %949 = vmatpush1.msra.mxu0 %v910
    %950 = vmatprep.subr.mxu0 0.0
    %951 = vmatpush2.msra.mxu0 0.0
    %952 = vmatprep.subr.mxu0 0.0
    %953 = vmatpush2.msra.mxu0 0.0
    %954 = vmatprep.subr.mxu0 0.0
    %955 = vmatpush2.msra.mxu0 0.0
    %956 = vmatprep.subr.mxu0 0.0
    %957 = vmatpush2.msra.mxu0 0.0
    %958 = vmatprep.subr.mxu0 0.0
    %959 = vmatpush2.msra.mxu0 0.0
    %960 = vmatprep.subr.mxu0 0.0
    %961 = vmatpush2.msra.mxu0 0.0
    %962 = vmatprep.subr.mxu0 0.0
    %963 = vmatpush2.msra.mxu0 0.0
    %964 = vmatprep.subr.mxu0 0.0
    %965 = vmatpush2.msra.mxu0 0.0
    %966 = vmatprep.subr.mxu0 0.0
    %967 = vmatpush2.msra.mxu0 0.0
    %968 = vmatprep.subr.mxu0 0.0
    %969 = vmatpush2.msra.mxu0 0.0
    %970 = vmatprep.subr.mxu0 0.0
    %971 = vmatpush2.msra.mxu0 0.0
    %972 = vmatprep.subr.mxu0 0.0
    %973 = vmatpush2.msra.mxu0 0.0
    %974 = vmatprep.subr.mxu0 0.0
    %975 = vmatpush2.msra.mxu0 0.0
    %976 = vmatprep.subr.mxu0 0.0
    %977 = vmatpush2.msra.mxu0 0.0
    %978 = vmatprep.subr.mxu0 0.0
    %979 = vmatpush2.msra.mxu0 0.0
    %980 = vmatprep.subr.mxu0 0.0
    %981 = vmatpush2.msra.mxu0 0.0
    %982 = vmatprep.mubr.f32.mxu0 0.0
    %983 = vmatmul.mubr.f32.gmra.mxu0 %v141
    %v984 = vpop.f32.mrf.mxu0
    %v985 = vadd.f32 0.0, %v984
    %v986 = vpop.f32.mrf.mxu0
    %v987 = vadd.f32 0.0, %v986
    %988 = vdwg.mxu0
    %989 = vmatprep.subr.mxu0 0.0
    %990 = vmatpush1.msra.mxu0 0.0
    %991 = vmatprep.subr.mxu0 0.0
    %992 = vmatpush1.msra.mxu0 0.0
    %993 = vmatprep.subr.mxu0 0.0
    %994 = vmatpush1.msra.mxu0 0.0
    %995 = vmatprep.subr.mxu0 0.0
    %996 = vmatpush1.msra.mxu0 0.0
    %997 = vmatprep.subr.mxu0 0.0
    %998 = vmatpush1.msra.mxu0 0.0
    %999 = vmatprep.subr.mxu0 0.0
    %1000 = vmatpush1.msra.mxu0 0.0
    %1001 = vmatprep.subr.mxu0 0.0
    %1002 = vmatpush1.msra.mxu0 0.0
    %1003 = vmatprep.subr.mxu0 0.0
    %1004 = vmatpush1.msra.mxu0 0.0
    %1005 = vmatprep.subr.mxu0 0.0
    %1006 = vmatpush1.msra.mxu0 0.0
    %1007 = vmatprep.subr.mxu0 0.0
    %1008 = vmatpush1.msra.mxu0 0.0
    %1009 = vmatprep.subr.mxu0 0.0
    %1010 = vmatpush1.msra.mxu0 0.0
    %1011 = vmatprep.subr.mxu0 0.0
    %1012 = vmatpush1.msra.mxu0 0.0
    %1013 = vmatprep.subr.mxu0 0.0
    %1014 = vmatpush1.msra.mxu0 0.0
    %1015 = vmatprep.subr.mxu0 0.0
    %1016 = vmatpush1.msra.mxu0 0.0
    %1017 = vmatprep.subr.mxu0 0.0
    %1018 = vmatpush1.msra.mxu0 0.0
    %1019 = vmatprep.subr.mxu0 0.0
    %1020 = vmatpush1.msra.mxu0 %v916
    %1021 = vmatprep.subr.mxu0 0.0
    %1022 = vmatpush2.msra.mxu0 0.0
    %1023 = vmatprep.subr.mxu0 0.0
    %1024 = vmatpush2.msra.mxu0 0.0
    %1025 = vmatprep.subr.mxu0 0.0
    %1026 = vmatpush2.msra.mxu0 0.0
    %1027 = vmatprep.subr.mxu0 0.0
    %1028 = vmatpush2.msra.mxu0 0.0
    %1029 = vmatprep.subr.mxu0 0.0
    %1030 = vmatpush2.msra.mxu0 0.0
    %1031 = vmatprep.subr.mxu0 0.0
    %1032 = vmatpush2.msra.mxu0 0.0
    %1033 = vmatprep.subr.mxu0 0.0
    %1034 = vmatpush2.msra.mxu0 0.0
    %1035 = vmatprep.subr.mxu0 0.0
    %1036 = vmatpush2.msra.mxu0 0.0
    %1037 = vmatprep.subr.mxu0 0.0
    %1038 = vmatpush2.msra.mxu0 0.0
    %1039 = vmatprep.subr.mxu0 0.0
    %1040 = vmatpush2.msra.mxu0 0.0
    %1041 = vmatprep.subr.mxu0 0.0
    %1042 = vmatpush2.msra.mxu0 0.0
    %1043 = vmatprep.subr.mxu0 0.0
    %1044 = vmatpush2.msra.mxu0 0.0
    %1045 = vmatprep.subr.mxu0 0.0
    %1046 = vmatpush2.msra.mxu0 0.0
    %1047 = vmatprep.subr.mxu0 0.0
    %1048 = vmatpush2.msra.mxu0 0.0
    %1049 = vmatprep.subr.mxu0 0.0
    %1050 = vmatpush2.msra.mxu0 0.0
    %1051 = vmatprep.subr.mxu0 0.0
    %1052 = vmatpush2.msra.mxu0 0.0
    %1053 = vmatprep.mubr.f32.mxu0 0.0
    %1054 = vmatmul.mubr.f32.gmra.mxu0 %v141
    %v1055 = vpop.f32.mrf.mxu0
    %v1056 = vadd.f32 0.0, %v1055
    %v1057 = vpop.f32.mrf.mxu0
    %1058 = vdwg.mxu0
    %v1059 = vsel %vm143, %v985, 0.0
    %v1060 = vsel %vm143, %v987, 0.0
    %v1061 = vadd.f32 %v1059, %v1060
    %v1062 = vsel %vm896, %v1056, 0.0
    %v1063 = vadd.f32 %v1061, %v1062
    %1064 = vadd.xlane.f32.xlu0 %v1063
    %v1065 = vpop.xlane.xlu0 %1064
    %v1066 = vmul.f32 %v1065, %v901
    %v1067 = vld [vmem:[%s8] sm:$0xf]
    %v1068 = vadd.f32 %v1066, 1e-05
    %v1069 = vrsqrt.pop %v1068
    %v1070 = vmul.f32 %v1067, %v1069
    %1072 = vset.pattern.permute.xlu0 0
    %1073 = vperm.xlu0 %1072, %v1070
    %v1074 = vpop.permute.xlu0 %1073
    %v1076 = vmul.f32 %v903, %v1074
    %v1077 = vmul.f32 %v904, %v1074
    %v1078 = vmul.f32 %v905, %v1074
    %v1079 = vld [vmem:[%s9] sm:$0xf]
    %1081 = vset.pattern.permute.xlu0 0
    %1082 = vperm.xlu0 %1081, %v1079
    %v1083 = vpop.permute.xlu0 %1082
    %v1085 = vadd.f32 %v1076, %v1083
    %v1086 = vadd.f32 %v1077, %v1083
    %v1087 = vadd.f32 %v1078, %v1083
    %vm1088 = vcmp.gt.f32.partialorder %v1085, 0.0
    %vm1089 = vcmp.gt.f32.partialorder %v1086, 0.0
    %vm1090 = vcmp.gt.f32.partialorder %v1087, 0.0
    %v1091 = vld [vmem:[%s10] sm:$0xf]
    %1093 = vset.pattern.permute.xlu0 0
    %1094 = vperm.xlu0 %1093, %v1091
    %v1095 = vpop.permute.xlu0 %1094
    %v1097 = vmul.f32 %v1095, %v1085
    %v1098 = vmul.f32 %v1095, %v1086
    %v1099 = vmul.f32 %v1095, %v1087
    %v1100 = vsel %vm1088, %v1085, %v1097
    %v1101 = vsel %vm1089, %v1086, %v1098
    %v1102 = vsel %vm1090, %v1087, %v1099
    %v1103 = vld [vmem:[%s15] sm:$0xff]
    %v1104 = vld [vmem:[%s15 + $0x8] sm:$0xff]
    %v1105 = vld [vmem:[%s15 + $0x10] sm:$0xff]
    %v1106 = vld [vmem:[%s15 + $0x18] sm:$0xff]
    %v1107 = vld [vmem:[%s15 + $0x20] sm:$0xff]
    %v1108 = vld [vmem:[%s15 + $0x28] sm:$0xff]
    %v1109 = vld [vmem:[%s15 + $0x30] sm:$0xff]
    %v1110 = vld [vmem:[%s15 + $0x38] sm:$0xff]
    %v1111 = vld [vmem:[%s15 + $0x40] sm:$0xff]
    %v1112 = vld [vmem:[%s15 + $0x48] sm:$0xff]
    %v1113 = vld [vmem:[%s15 + $0x50] sm:$0xff]
    %v1114 = vld [vmem:[%s15 + $0x58] sm:$0xff]
    %v1115 = vld [vmem:[%s15 + $0x60] sm:$0xff]
    %v1116 = vld [vmem:[%s15 + $0x68] sm:$0xff]
    %v1117 = vld [vmem:[%s15 + $0x70] sm:$0xff]
    %v1118 = vld [vmem:[%s15 + $0x78] sm:$0xff]
    %v1119 = vld [vmem:[%s15 + $0x80] sm:$0xff]
    %v1120 = vld [vmem:[%s15 + $0x88] sm:$0xff]
    %v1121 = vld [vmem:[%s15 + $0x90] sm:$0xff]
    %v1122 = vld [vmem:[%s15 + $0x98] sm:$0xff]
    %v1123 = vld [vmem:[%s15 + $0xa0] sm:$0xff]
    %v1124 = vld [vmem:[%s15 + $0xa8] sm:$0xff]
    %v1125 = vld [vmem:[%s15 + $0xb0] sm:$0xff]
    %v1126 = vld [vmem:[%s15 + $0xb8] sm:$0xff]
    %v1127 = vld [vmem:[%s15 + $0xc0] sm:$0xff]
    %v1128 = vld [vmem:[%s15 + $0xc8] sm:$0xff]
    %v1129 = vld [vmem:[%s15 + $0xd0] sm:$0xff]
    %v1130 = vld [vmem:[%s15 + $0xd8] sm:$0xff]
    %v1131 = vld [vmem:[%s15 + $0xe0] sm:$0xff]
    %v1132 = vld [vmem:[%s15 + $0xe8] sm:$0xff]
    %v1133 = vld [vmem:[%s15 + $0xf0] sm:$0xff]
    %v1134 = vld [vmem:[%s15 + $0xf8] sm:$0xff]
    %v1135 = vld [vmem:[%s15 + $0x100] sm:$0xff]
    %v1136 = vld [vmem:[%s15 + $0x108] sm:$0xff]
    %v1137 = vld [vmem:[%s15 + $0x110] sm:$0xff]
    %v1138 = vld [vmem:[%s15 + $0x118] sm:$0xff]
    %v1139 = vld [vmem:[%s15 + $0x120] sm:$0xff]
    %v1140 = vld [vmem:[%s15 + $0x128] sm:$0xff]
    %v1141 = vld [vmem:[%s15 + $0x130] sm:$0xff]
    %v1142 = vld [vmem:[%s15 + $0x138] sm:$0xff]
    %v1143 = vld [vmem:[%s15 + $0x140] sm:$0xff]
    %v1144 = vld [vmem:[%s15 + $0x148] sm:$0xff]
    %v1145 = vld [vmem:[%s15 + $0x150] sm:$0xff]
    %v1146 = vld [vmem:[%s15 + $0x158] sm:$0xff]
    %v1147 = vld [vmem:[%s15 + $0x160] sm:$0xff]
    %v1148 = vld [vmem:[%s15 + $0x168] sm:$0xff]
    %v1149 = vld [vmem:[%s15 + $0x170] sm:$0xff]
    %v1150 = vld [vmem:[%s15 + $0x178] sm:$0xff]
    %v1151 = vld [vmem:[%s15 + $0x180] sm:$0xff]
    %v1152 = vld [vmem:[%s15 + $0x188] sm:$0xff]
    %v1153 = vld [vmem:[%s15 + $0x190] sm:$0xff]
    %v1154 = vld [vmem:[%s15 + $0x198] sm:$0xff]
    %v1155 = vld [vmem:[%s15 + $0x1a0] sm:$0xff]
    %v1156 = vld [vmem:[%s15 + $0x1a8] sm:$0xff]
    %v1157 = vld [vmem:[%s15 + $0x1b0] sm:$0xff]
    %v1158 = vld [vmem:[%s15 + $0x1b8] sm:$0xff]
    %v1159 = vld [vmem:[%s15 + $0x1c0] sm:$0xff]
    %v1160 = vld [vmem:[%s15 + $0x1c8] sm:$0xff]
    %v1161 = vld [vmem:[%s15 + $0x1d0] sm:$0xff]
    %v1162 = vld [vmem:[%s15 + $0x1d8] sm:$0xff]
    %v1163 = vld [vmem:[%s15 + $0x1e0] sm:$0xff]
    %v1164 = vld [vmem:[%s15 + $0x1e8] sm:$0xff]
    %v1165 = vld [vmem:[%s15 + $0x1f0] sm:$0xff]
    %v1166 = vld [vmem:[%s15 + $0x1f8] sm:$0xff]
    %v1167 = vld [vmem:[%s15 + $0x200] sm:$0xff]
    %v1168 = vld [vmem:[%s15 + $0x208] sm:$0xff]
    %v1169 = vld [vmem:[%s15 + $0x210] sm:$0xff]
    %v1170 = vld [vmem:[%s15 + $0x218] sm:$0xff]
    %v1171 = vld [vmem:[%s15 + $0x220] sm:$0xff]
    %v1172 = vld [vmem:[%s15 + $0x228] sm:$0xff]
    %v1173 = vld [vmem:[%s15 + $0x230] sm:$0xff]
    %v1174 = vld [vmem:[%s15 + $0x238] sm:$0xff]
    %v1175 = vld [vmem:[%s11] sm:$0xff]
    %vm1176 = vcmask 261120
    %v1178 = vsel %vm1176, %v1102, 0
    %1180 = vmatprep.subr.mxu0 %v1134
    %1181 = vmatpush1.msra.mxu0 %v1133
    %1182 = vmatprep.subr.mxu0 %v1132
    %1183 = vmatpush1.msra.mxu0 %v1131
    %1184 = vmatprep.subr.mxu0 %v1130
    %1185 = vmatpush1.msra.mxu0 %v1129
    %1186 = vmatprep.subr.mxu0 %v1128
    %1187 = vmatpush1.msra.mxu0 %v1127
    %1188 = vmatprep.subr.mxu0 %v1126
    %1189 = vmatpush1.msra.mxu0 %v1125
    %1190 = vmatprep.subr.mxu0 %v1124
    %1191 = vmatpush1.msra.mxu0 %v1123
    %1192 = vmatprep.subr.mxu0 %v1122
    %1193 = vmatpush1.msra.mxu0 %v1121
    %1194 = vmatprep.subr.mxu0 %v1120
    %1195 = vmatpush1.msra.mxu0 %v1119
    %1196 = vmatprep.subr.mxu0 %v1118
    %1197 = vmatpush1.msra.mxu0 %v1117
    %1198 = vmatprep.subr.mxu0 %v1116
    %1199 = vmatpush1.msra.mxu0 %v1115
    %1200 = vmatprep.subr.mxu0 %v1114
    %1201 = vmatpush1.msra.mxu0 %v1113
    %1202 = vmatprep.subr.mxu0 %v1112
    %1203 = vmatpush1.msra.mxu0 %v1111
    %1204 = vmatprep.subr.mxu0 %v1110
    %1205 = vmatpush1.msra.mxu0 %v1109
    %1206 = vmatprep.subr.mxu0 %v1108
    %1207 = vmatpush1.msra.mxu0 %v1107
    %1208 = vmatprep.subr.mxu0 %v1106
    %1209 = vmatpush1.msra.mxu0 %v1105
    %1210 = vmatprep.subr.mxu0 %v1104
    %1211 = vmatpush1.msra.mxu0 %v1103
    %1212 = vmatprep.subr.mxu0 %v1166
    %1213 = vmatpush2.msra.mxu0 %v1165
    %1214 = vmatprep.subr.mxu0 %v1164
    %1215 = vmatpush2.msra.mxu0 %v1163
    %1216 = vmatprep.subr.mxu0 %v1162
    %1217 = vmatpush2.msra.mxu0 %v1161
    %1218 = vmatprep.subr.mxu0 %v1160
    %1219 = vmatpush2.msra.mxu0 %v1159
    %1220 = vmatprep.subr.mxu0 %v1158
    %1221 = vmatpush2.msra.mxu0 %v1157
    %1222 = vmatprep.subr.mxu0 %v1156
    %1223 = vmatpush2.msra.mxu0 %v1155
    %1224 = vmatprep.subr.mxu0 %v1154
    %1225 = vmatpush2.msra.mxu0 %v1153
    %1226 = vmatprep.subr.mxu0 %v1152
    %1227 = vmatpush2.msra.mxu0 %v1151
    %1228 = vmatprep.subr.mxu0 %v1150
    %1229 = vmatpush2.msra.mxu0 %v1149
    %1230 = vmatprep.subr.mxu0 %v1148
    %1231 = vmatpush2.msra.mxu0 %v1147
    %1232 = vmatprep.subr.mxu0 %v1146
    %1233 = vmatpush2.msra.mxu0 %v1145
    %1234 = vmatprep.subr.mxu0 %v1144
    %1235 = vmatpush2.msra.mxu0 %v1143
    %1236 = vmatprep.subr.mxu0 %v1142
    %1237 = vmatpush2.msra.mxu0 %v1141
    %1238 = vmatprep.subr.mxu0 %v1140
    %1239 = vmatpush2.msra.mxu0 %v1139
    %1240 = vmatprep.subr.mxu0 %v1138
    %1241 = vmatpush2.msra.mxu0 %v1137
    %1242 = vmatprep.subr.mxu0 %v1136
    %1243 = vmatpush2.msra.mxu0 %v1135
    %1244 = vmatprep.mubr.f32.mxu0 %v1101
    %1245 = vmatmul.mubr.f32.gmra.mxu0 %v1100
    %v1246 = vpop.f32.mrf.mxu0
    %v1247 = vadd.f32 %v344, %v1246
    %v1248 = vpop.f32.mrf.mxu0
    %v1249 = vadd.f32 %v345, %v1248
    %1250 = vdwg.mxu0
    %1251 = vmatprep.subr.mxu0 0.0
    %1252 = vmatpush1.msra.mxu0 0.0
    %1253 = vmatprep.subr.mxu0 0.0
    %1254 = vmatpush1.msra.mxu0 0.0
    %1255 = vmatprep.subr.mxu0 0.0
    %1256 = vmatpush1.msra.mxu0 0.0
    %1257 = vmatprep.subr.mxu0 0.0
    %1258 = vmatpush1.msra.mxu0 0.0
    %1259 = vmatprep.subr.mxu0 0.0
    %1260 = vmatpush1.msra.mxu0 0.0
    %1261 = vmatprep.subr.mxu0 0.0
    %1262 = vmatpush1.msra.mxu0 0.0
    %1263 = vmatprep.subr.mxu0 0.0
    %1264 = vmatpush1.msra.mxu0 0.0
    %1265 = vmatprep.subr.mxu0 0.0
    %1266 = vmatpush1.msra.mxu0 0.0
    %1267 = vmatprep.subr.mxu0 0.0
    %1268 = vmatpush1.msra.mxu0 0.0
    %1269 = vmatprep.subr.mxu0 0.0
    %1270 = vmatpush1.msra.mxu0 0.0
    %1271 = vmatprep.subr.mxu0 0.0
    %1272 = vmatpush1.msra.mxu0 0.0
    %1273 = vmatprep.subr.mxu0 0.0
    %1274 = vmatpush1.msra.mxu0 0.0
    %1275 = vmatprep.subr.mxu0 %v1174
    %1276 = vmatpush1.msra.mxu0 %v1173
    %1277 = vmatprep.subr.mxu0 %v1172
    %1278 = vmatpush1.msra.mxu0 %v1171
    %1279 = vmatprep.subr.mxu0 %v1170
    %1280 = vmatpush1.msra.mxu0 %v1169
    %1281 = vmatprep.subr.mxu0 %v1168
    %1282 = vmatpush1.msra.mxu0 %v1167
    %1283 = vmatprep.subr.mxu0 0.0
    %1284 = vmatpush2.msra.mxu0 0.0
    %1285 = vmatprep.subr.mxu0 0.0
    %1286 = vmatpush2.msra.mxu0 0.0
    %1287 = vmatprep.subr.mxu0 0.0
    %1288 = vmatpush2.msra.mxu0 0.0
    %1289 = vmatprep.subr.mxu0 0.0
    %1290 = vmatpush2.msra.mxu0 0.0
    %1291 = vmatprep.subr.mxu0 0.0
    %1292 = vmatpush2.msra.mxu0 0.0
    %1293 = vmatprep.subr.mxu0 0.0
    %1294 = vmatpush2.msra.mxu0 0.0
    %1295 = vmatprep.subr.mxu0 0.0
    %1296 = vmatpush2.msra.mxu0 0.0
    %1297 = vmatprep.subr.mxu0 0.0
    %1298 = vmatpush2.msra.mxu0 0.0
    %1299 = vmatprep.subr.mxu0 0.0
    %1300 = vmatpush2.msra.mxu0 0.0
    %1301 = vmatprep.subr.mxu0 0.0
    %1302 = vmatpush2.msra.mxu0 0.0
    %1303 = vmatprep.subr.mxu0 0.0
    %1304 = vmatpush2.msra.mxu0 0.0
    %1305 = vmatprep.subr.mxu0 0.0
    %1306 = vmatpush2.msra.mxu0 0.0
    %1307 = vmatprep.subr.mxu0 0.0
    %1308 = vmatpush2.msra.mxu0 0.0
    %1309 = vmatprep.subr.mxu0 0.0
    %1310 = vmatpush2.msra.mxu0 0.0
    %1311 = vmatprep.subr.mxu0 0.0
    %1312 = vmatpush2.msra.mxu0 0.0
    %1313 = vmatprep.subr.mxu0 0.0
    %1314 = vmatpush2.msra.mxu0 0.0
    %1315 = vmatprep.mubr.f32.mxu0 0.0
    %1316 = vmatmul.mubr.f32.gmra.mxu0 %v1178
    %v1317 = vpop.f32.mrf.mxu0
    %v1318 = vadd.f32 %v1247, %v1317
    %v1319 = vpop.f32.mrf.mxu0
    %v1320 = vadd.f32 %v1249, %v1319
    %1321 = vdwg.mxu0
    %v1322 = vld [vmem:[%s12] sm:$0xff]
    %1324 = vset.pattern.permute.xlu0 0
    %1325 = vperm.xlu0 %1324, %v1322
    %v1326 = vpop.permute.xlu0 %1325
    %v1329 = vsel %vm139, %v1175, 0
    %v1332 = vsel %vm143, %v1318, 0
    %v1335 = vsel %vm143, %v1320, 0
    %1337 = vmatprep.subr.mxu0 0.0
    %1338 = vmatpush1.msra.mxu0 0.0
    %1339 = vmatprep.subr.mxu0 0.0
    %1340 = vmatpush1.msra.mxu0 0.0
    %1341 = vmatprep.subr.mxu0 0.0
    %1342 = vmatpush1.msra.mxu0 0.0
    %1343 = vmatprep.subr.mxu0 0.0
    %1344 = vmatpush1.msra.mxu0 0.0
    %1345 = vmatprep.subr.mxu0 0.0
    %1346 = vmatpush1.msra.mxu0 0.0
    %1347 = vmatprep.subr.mxu0 0.0
    %1348 = vmatpush1.msra.mxu0 0.0
    %1349 = vmatprep.subr.mxu0 0.0
    %1350 = vmatpush1.msra.mxu0 0.0
    %1351 = vmatprep.subr.mxu0 0.0
    %1352 = vmatpush1.msra.mxu0 0.0
    %1353 = vmatprep.subr.mxu0 0.0
    %1354 = vmatpush1.msra.mxu0 0.0
    %1355 = vmatprep.subr.mxu0 0.0
    %1356 = vmatpush1.msra.mxu0 0.0
    %1357 = vmatprep.subr.mxu0 0.0
    %1358 = vmatpush1.msra.mxu0 0.0
    %1359 = vmatprep.subr.mxu0 0.0
    %1360 = vmatpush1.msra.mxu0 0.0
    %1361 = vmatprep.subr.mxu0 0.0
    %1362 = vmatpush1.msra.mxu0 0.0
    %1363 = vmatprep.subr.mxu0 0.0
    %1364 = vmatpush1.msra.mxu0 0.0
    %1365 = vmatprep.subr.mxu0 0.0
    %1366 = vmatpush1.msra.mxu0 0.0
    %1367 = vmatprep.subr.mxu0 %v1335
    %1368 = vmatpush1.msra.mxu0 %v1332
    %1369 = vmatprep.subr.mxu0 0.0
    %1370 = vmatpush2.msra.mxu0 0.0
    %1371 = vmatprep.subr.mxu0 0.0
    %1372 = vmatpush2.msra.mxu0 0.0
    %1373 = vmatprep.subr.mxu0 0.0
    %1374 = vmatpush2.msra.mxu0 0.0
    %1375 = vmatprep.subr.mxu0 0.0
    %1376 = vmatpush2.msra.mxu0 0.0
    %1377 = vmatprep.subr.mxu0 0.0
    %1378 = vmatpush2.msra.mxu0 0.0
    %1379 = vmatprep.subr.mxu0 0.0
    %1380 = vmatpush2.msra.mxu0 0.0
    %1381 = vmatprep.subr.mxu0 0.0
    %1382 = vmatpush2.msra.mxu0 0.0
    %1383 = vmatprep.subr.mxu0 0.0
    %1384 = vmatpush2.msra.mxu0 0.0
    %1385 = vmatprep.subr.mxu0 0.0
    %1386 = vmatpush2.msra.mxu0 0.0
    %1387 = vmatprep.subr.mxu0 0.0
    %1388 = vmatpush2.msra.mxu0 0.0
    %1389 = vmatprep.subr.mxu0 0.0
    %1390 = vmatpush2.msra.mxu0 0.0
    %1391 = vmatprep.subr.mxu0 0.0
    %1392 = vmatpush2.msra.mxu0 0.0
    %1393 = vmatprep.subr.mxu0 0.0
    %1394 = vmatpush2.msra.mxu0 0.0
    %1395 = vmatprep.subr.mxu0 0.0
    %1396 = vmatpush2.msra.mxu0 0.0
    %1397 = vmatprep.subr.mxu0 0.0
    %1398 = vmatpush2.msra.mxu0 0.0
    %1399 = vmatprep.subr.mxu0 0.0
    %1400 = vmatpush2.msra.mxu0 0.0
    %1401 = vmatprep.mubr.f32.mxu0 0.0
    %1402 = vmatmul.mubr.f32.gmra.mxu0 %v1329
    %v1403 = vpop.f32.mrf.mxu0
    %v1404 = vadd.f32 %v1326, %v1403
    %v1405 = vpop.f32.mrf.mxu0
    %v1406 = vadd.f32 %v1326, %v1405
    %1407 = vdwg.mxu0
    %1408 = vst [vmem:[#allocation2] sm:$0xff] %v1404
    %1409 = vst [vmem:[#allocation2 + $0x8] sm:$0xff] %v1406
    // Predicated region
    $region66: #{tpu_custom_call.1} parent=1 // pred_check
      _
    $region67: #{tpu_custom_call.1} parent=1 // pred_check_branch
      %1411 = sbr.rel (0) target = $region69
    $region68: #{tpu_custom_call.1} parent=1 // pred_region
      %s1413 = ssub.s32 256, 256
      %1414 = vsyncadd [#allocation3], %s1413
      %s1416 = sshll.u32 [#allocation2], 4
      %s1417 = int_to_ptr.vmem [resolvable:$true] %s1416
      %1419 = dma.vmem_to_hbm [thread:$0]  %s1417, 256, %s16, [#allocation3]
    $region69: #{tpu_custom_call.1} parent=1 // pred_fallthru
      _
    // Predicated region
    $region70: #{tpu_custom_call.1} parent=1 // pred_check
      _
    $region71: #{tpu_custom_call.1} parent=1 // pred_check_branch
      %1421 = sbr.rel (0) target = $region73
    $region72: #{tpu_custom_call.1} parent=1 // pred_region
      %1422 = dma.done [#allocation3], 256
    $region73: #{tpu_custom_call.1} parent=1 // pred_fallthru
      _
    %1423 = vsyncpa [#allocation3], 1

</llo_original>
